<compile_context>
chip_gen: v7x
topology: tpu7x:2x2x1
jax: 0.10.0
libtpu: 0.0.40
codegen_flags: <defaults>
</compile_context>

<pallas_src>
import functools

import jax
import jax.numpy as jnp
from jax.experimental import pallas as pl
from jax.experimental.pallas import tpu as pltpu

EPS = 1e-9       # matches model.py EPS (a constant shift: cancels under log_softmax)
TEMP = 0.66      # digit_temp (stored on the module; unused in forward math)
LANES = 128      # lane-dense packed-output width
NEG_BIG = -1e30  # finite "-inf" stand-in for masked lanes


def _round_up(x, m):
    return (x + m - 1) // m * m


# ---------------------------------------------------------------------------
# Fused kernel: 4-layer MLP + log_softmax + cross-entropy + argmax-error, on one
# (TB, ·) batch-row tile.  Weights are bf16 and VMEM-resident; accumulation f32.
# ---------------------------------------------------------------------------
def decoder_b_kernel(z_ref, lab_ref, w1_ref, w2_ref, w3_ref, w4_ref, bias_ref,
                     out_ref, *, num_digits):
    b1 = bias_ref[0:1, :]                 # (1, 512) f32
    b2 = bias_ref[1:2, :]
    b3 = bias_ref[2:3, :]
    b4 = bias_ref[3:4, 0:LANES]           # (1, 128) f32 (cols >= num_digits are zero)

    # dec_hidden: Linear + ReLU x3 (bf16 MXU inputs, f32 accumulate, f32 elementwise)
    x = z_ref[...]                                                     # (TB, zdim) f32
    h = jnp.dot(x.astype(jnp.bfloat16), w1_ref[...],
                preferred_element_type=jnp.float32) + b1
    h = jnp.maximum(h, 0.0)
    h = jnp.dot(h.astype(jnp.bfloat16), w2_ref[...],
                preferred_element_type=jnp.float32) + b2
    h = jnp.maximum(h, 0.0)
    h = jnp.dot(h.astype(jnp.bfloat16), w3_ref[...],
                preferred_element_type=jnp.float32) + b3
    h = jnp.maximum(h, 0.0)

    # dec_label: Linear(512, num_digits) padded to 128 lanes (padding cols of w4/b4 are zero)
    logits = jnp.dot(h.astype(jnp.bfloat16), w4_ref[...],
                     preferred_element_type=jnp.float32) + b4          # (TB, 128)

    # numerically-stable log_softmax over the real digit lanes only.
    # (the torch source's `+ EPS` is a constant shift and cancels here, so it is dropped)
    col = jax.lax.broadcasted_iota(jnp.int32, logits.shape, 1)         # (TB, 128)
    valid = col < num_digits
    masked = jnp.where(valid, logits, NEG_BIG)
    m = jnp.max(masked, axis=-1, keepdims=True)
    s = masked - m
    e = jnp.where(valid, jnp.exp(s), 0.0)
    logp = s - jnp.log(jnp.sum(e, axis=-1, keepdims=True))
    logp_v = jnp.where(valid, logp, 0.0)                               # zero padding lanes

    # p.loss #1:  -(target * y_pred).sum(-1)
    lab = lab_ref[...]                                                 # (TB, 128) packed labels
    ce = -jnp.sum(lab * logp_v, axis=-1, keepdims=True)                # (TB, 1)

    # p.loss #2:  1 - (argmax(pred) == argmax(target)); reuse m for the prediction argmax,
    # first-index tie-break (matches torch .max(-1)[1]); target argmax precomputed in col ND.
    ids = col.astype(jnp.float32)
    pred_idx = jnp.min(jnp.where(masked >= m, ids, float(LANES)), axis=-1, keepdims=True)
    tgt_idx = jnp.sum(jnp.where(col == num_digits, lab, 0.0), axis=-1, keepdims=True)
    err = 1.0 - (pred_idx == tgt_idx).astype(jnp.float32)              # (TB, 1)

    # lane-dense packed writeback: cols 0..ND-1 = log_softmax, col ND = CE, col ND+1 = error
    out = jnp.where(col == num_digits, ce,
                    jnp.where(col == num_digits + 1, err, logp_v))
    out_ref[...] = out


# ---------------------------------------------------------------------------
# Wrapper: one pallas_call over a (batch-tile, sample) grid.  Weights stay resident
# (constant index_maps); labels are DMA'd once per batch tile (not per sample).
# ---------------------------------------------------------------------------
def decoder_b_forward(params, labels, z_shared):
    S, B, zdim = z_shared.shape
    num_digits = labels.shape[-1]
    assert num_digits + 2 <= LANES
    H = params["w2t"].shape[0]

    # batch-row tile: multiples of 8 sublanes (256 when the batch is large enough)
    TB = 256 if B >= 256 else _round_up(B, 8)
    B_pad = _round_up(B, TB)

    z_pad = jnp.zeros((S, B_pad, zdim), jnp.float32)
    z_pad = z_pad.at[:, :B, :].set(z_shared.astype(jnp.float32))

    # packed labels: cols 0..ND-1 = one-hot/soft labels, col ND = target argmax (float)
    lab_pack = jnp.zeros((B_pad, LANES), jnp.float32)
    lab_pack = lab_pack.at[:B, :num_digits].set(labels.astype(jnp.float32))
    lab_pack = lab_pack.at[:B, num_digits].set(jnp.argmax(labels, axis=-1).astype(jnp.float32))

    grid = (B_pad // TB, S)   # samples innermost -> label tile reused across all S steps
    kernel = functools.partial(decoder_b_kernel, num_digits=num_digits)

    out = pl.pallas_call(
        kernel,
        out_shape=jax.ShapeDtypeStruct((S, B_pad, LANES), jnp.float32),
        grid_spec=pltpu.PrefetchScalarGridSpec(
            num_scalar_prefetch=0,
            grid=grid,
            in_specs=[
                pl.BlockSpec((None, TB, zdim), lambda b, s: (s, b, 0)),   # zShared rows
                pl.BlockSpec((TB, LANES),      lambda b, s: (b, 0)),      # packed labels
                pl.BlockSpec((zdim, H),        lambda b, s: (0, 0)),      # w1 (VMEM-resident)
                pl.BlockSpec((H, H),           lambda b, s: (0, 0)),      # w2
                pl.BlockSpec((H, H),           lambda b, s: (0, 0)),      # w3
                pl.BlockSpec((H, LANES),       lambda b, s: (0, 0)),      # w4 (lane-padded)
                pl.BlockSpec((8, H),           lambda b, s: (0, 0)),      # packed biases
            ],
            out_specs=pl.BlockSpec((None, TB, LANES), lambda b, s: (s, b, 0)),
        ),
        compiler_params=pltpu.CompilerParams(
            dimension_semantics=("parallel", "parallel"),
            vmem_limit_bytes=32 * 1024 * 1024,
        ),
    )(z_pad, lab_pack,
      params["w1t"], params["w2t"], params["w3t"], params["w4t"], params["bias"])

    out = out[:, :B, :]
    pred_labels = out[..., :num_digits]          # (S, B, num_digits) log_softmax
    loss_labels = out[..., num_digits]           # (S, B)  'labels_sharedB'
    loss_acc = out[..., num_digits + 1]          # (S, B)  'labels_acc_sharedB'
    return pred_labels, loss_labels, loss_acc


# ---------------------------------------------------------------------------
# Deterministic Kaiming-style init (synthetic weights, matches weight_init()).
# nn.Linear weights (out,in) are stored transposed (in,out) and cast to bf16;
# w4 is lane-padded to 128 cols; all biases are packed into one (8, H) f32 block.
# ---------------------------------------------------------------------------
def init_params(key, zShared_dim=10, num_hidden=512, num_digits=10):
    ks = jax.random.split(key, 4)

    def kaiming_t(k, out_dim, in_dim):
        w = jax.random.normal(k, (out_dim, in_dim), jnp.float32) * jnp.sqrt(2.0 / in_dim)
        return w.T  # (in, out) so the kernel computes x @ W

    w1t = kaiming_t(ks[0], num_hidden, zShared_dim)
    w2t = kaiming_t(ks[1], num_hidden, num_hidden)
    w3t = kaiming_t(ks[2], num_hidden, num_hidden)
    w4t = kaiming_t(ks[3], num_digits, num_hidden)
    w4t_pad = jnp.zeros((num_hidden, LANES), jnp.float32).at[:, :num_digits].set(w4t)

    # rows 0..2 = b1..b3, row 3 cols 0..num_digits-1 = b4 (kaiming_init zeros the biases)
    bias = jnp.zeros((8, num_hidden), jnp.float32)

    return {
        "w1t": w1t.astype(jnp.bfloat16),
        "w2t": w2t.astype(jnp.bfloat16),
        "w3t": w3t.astype(jnp.bfloat16),
        "w4t": w4t_pad.astype(jnp.bfloat16),
        "bias": bias,
    }


# Pure-JAX reference (same bf16 weights / bf16 matmul inputs, f32 accumulation).
def decoder_b_reference(params, labels, z_shared):
    S, B, zdim = z_shared.shape
    num_digits = labels.shape[-1]
    bias = params["bias"]
    x = z_shared.reshape(S * B, zdim)

    def lin(v, wt):
        return jnp.dot(v.astype(jnp.bfloat16), wt, preferred_element_type=jnp.float32)

    h = jnp.maximum(lin(x, params["w1t"]) + bias[0], 0.0)
    h = jnp.maximum(lin(h, params["w2t"]) + bias[1], 0.0)
    h = jnp.maximum(lin(h, params["w3t"]) + bias[2], 0.0)
    logits = lin(h, params["w4t"])[:, :num_digits] + bias[3, :num_digits]
    logp = jax.nn.log_softmax(logits + EPS, axis=-1)
    lab = jnp.broadcast_to(labels[None], (S, B, num_digits)).reshape(S * B, num_digits)
    ce = -jnp.sum(lab * logp, axis=-1)
    err = 1.0 - (jnp.argmax(logp, axis=-1) == jnp.argmax(lab, axis=-1)).astype(jnp.float32)
    return (logp.reshape(S, B, num_digits), ce.reshape(S, B), err.reshape(S, B))


if __name__ == "__main__":
    key = jax.random.PRNGKey(0)
    k_z, k_lab, k_params = jax.random.split(key, 3)

    S, B, zdim, num_digits = 2, 2, 10, 10          # num_samples, batch, zShared_dim, digits
    z_shared = jax.random.normal(k_z, (S, B, zdim), jnp.float32)
    lab_idx = jax.random.randint(k_lab, (B,), 0, num_digits)
    labels = jax.nn.one_hot(lab_idx, num_digits, dtype=jnp.float32)

    params = init_params(k_params, zdim, 512, num_digits)

    pred_labels, loss_labels, loss_acc = decoder_b_forward(params, labels, z_shared)
    jax.block_until_ready((pred_labels, loss_labels, loss_acc))

    assert pred_labels.shape == (S, B, num_digits)
    assert loss_labels.shape == (S, B)
    assert loss_acc.shape == (S, B)
    # log_softmax rows must exponentiate-sum to 1
    assert bool(jnp.allclose(jnp.sum(jnp.exp(pred_labels), axis=-1), 1.0, atol=1e-4))
    assert bool(jnp.all(jnp.isfinite(pred_labels)))
    assert bool(jnp.all(jnp.isfinite(loss_labels)))
    assert bool(jnp.all((loss_acc == 0.0) | (loss_acc == 1.0)))

    # compare against the pure-JAX reference (same bf16 weights)
    ref_logp, ref_ce, ref_err = decoder_b_reference(params, labels, z_shared)
    assert bool(jnp.allclose(pred_labels, ref_logp, atol=5e-2, rtol=5e-2))
    assert bool(jnp.allclose(loss_labels, ref_ce, atol=5e-2, rtol=5e-2))
    assert bool(jnp.all(loss_acc == ref_err))

    print("KERNEL_OK")
</pallas_src>

<mosaic_0001>
module attributes {stable_mosaic.version = 11 : i64} {
  func.func @decoder_b_kernel(%arg0: i32, %arg1: i32, %arg2: memref<1x8x10xf32, #tpu.memory_space<vmem>>, %arg3: memref<8x128xf32, #tpu.memory_space<vmem>>, %arg4: memref<10x512xbf16, #tpu.memory_space<vmem>>, %arg5: memref<512x512xbf16, #tpu.memory_space<vmem>>, %arg6: memref<512x512xbf16, #tpu.memory_space<vmem>>, %arg7: memref<512x128xbf16, #tpu.memory_space<vmem>>, %arg8: memref<8x512xf32, #tpu.memory_space<vmem>>, %arg9: memref<1x8x128xf32, #tpu.memory_space<vmem>>) attributes {dimension_semantics = [#tpu.dimension_semantics<parallel>, #tpu.dimension_semantics<parallel>], iteration_bounds = array<i64: 1, 2>, scalar_prefetch = 0 : i64, scratch_operands = 0 : i64, tpu.core_type = #tpu.core_type<tc>, window_params = [{transform_indices = @transform_0, window_bounds = array<i64: 1, 8, 10>}, {transform_indices = @transform_1, window_bounds = array<i64: 8, 128>}, {pipeline_mode = #tpu.pipeline_mode<synchronous>, transform_indices = @transform_2, window_bounds = array<i64: 10, 512>}, {pipeline_mode = #tpu.pipeline_mode<synchronous>, transform_indices = @transform_3, window_bounds = array<i64: 512, 512>}, {pipeline_mode = #tpu.pipeline_mode<synchronous>, transform_indices = @transform_4, window_bounds = array<i64: 512, 512>}, {pipeline_mode = #tpu.pipeline_mode<synchronous>, transform_indices = @transform_5, window_bounds = array<i64: 512, 128>}, {pipeline_mode = #tpu.pipeline_mode<synchronous>, transform_indices = @transform_6, window_bounds = array<i64: 8, 512>}, {transform_indices = @transform_7, window_bounds = array<i64: 1, 8, 128>}]} {
    %c0 = arith.constant 0 : index
    %c0_0 = arith.constant 0 : index
    %0 = vector.load %arg8[%c0, %c0_0] : memref<8x512xf32, #tpu.memory_space<vmem>>, vector<1x512xf32>
    %c1 = arith.constant 1 : index
    %c0_1 = arith.constant 0 : index
    %1 = vector.load %arg8[%c1, %c0_1] : memref<8x512xf32, #tpu.memory_space<vmem>>, vector<1x512xf32>
    %c2 = arith.constant 2 : index
    %c0_2 = arith.constant 0 : index
    %2 = vector.load %arg8[%c2, %c0_2] : memref<8x512xf32, #tpu.memory_space<vmem>>, vector<1x512xf32>
    %c3 = arith.constant 3 : index
    %c0_3 = arith.constant 0 : index
    %3 = vector.load %arg8[%c3, %c0_3] : memref<8x512xf32, #tpu.memory_space<vmem>>, vector<1x128xf32>
    %c0_4 = arith.constant 0 : index
    %c0_5 = arith.constant 0 : index
    %c0_6 = arith.constant 0 : index
    %4 = vector.load %arg2[%c0_4, %c0_5, %c0_6] : memref<1x8x10xf32, #tpu.memory_space<vmem>>, vector<1x8x10xf32>
    %5 = vector.shape_cast %4 : vector<1x8x10xf32> to vector<8x10xf32>
    %6 = arith.truncf %5 : vector<8x10xf32> to vector<8x10xbf16>
    %c0_7 = arith.constant 0 : index
    %c0_8 = arith.constant 0 : index
    %7 = vector.load %arg4[%c0_7, %c0_8] : memref<10x512xbf16, #tpu.memory_space<vmem>>, vector<10x512xbf16>
    %cst = arith.constant dense<0.000000e+00> : vector<8x512xf32>
    %8 = tpu.matmul %6, %7, %cst {dimension_numbers = #tpu.dot_dimension_numbers<[1], [0], [0], [1], [0, 0, 1, 1], [], []>} : vector<8x10xbf16>, vector<10x512xbf16>, vector<8x512xf32> -> vector<8x512xf32>
    %9 = vector.broadcast %0 : vector<1x512xf32> to vector<8x512xf32>
    %10 = arith.addf %8, %9 : vector<8x512xf32>
    %cst_9 = arith.constant 0.000000e+00 : f32
    %11 = vector.broadcast %cst_9 : f32 to vector<8x512xf32>
    %12 = arith.maximumf %10, %11 : vector<8x512xf32>
    %13 = arith.truncf %12 : vector<8x512xf32> to vector<8x512xbf16>
    %c0_10 = arith.constant 0 : index
    %c0_11 = arith.constant 0 : index
    %14 = vector.load %arg5[%c0_10, %c0_11] : memref<512x512xbf16, #tpu.memory_space<vmem>>, vector<512x512xbf16>
    %cst_12 = arith.constant dense<0.000000e+00> : vector<8x512xf32>
    %15 = tpu.matmul %13, %14, %cst_12 {dimension_numbers = #tpu.dot_dimension_numbers<[1], [0], [0], [1], [0, 0, 1, 1], [], []>} : vector<8x512xbf16>, vector<512x512xbf16>, vector<8x512xf32> -> vector<8x512xf32>
    %16 = vector.broadcast %1 : vector<1x512xf32> to vector<8x512xf32>
    %17 = arith.addf %15, %16 : vector<8x512xf32>
    %cst_13 = arith.constant 0.000000e+00 : f32
    %18 = vector.broadcast %cst_13 : f32 to vector<8x512xf32>
    %19 = arith.maximumf %17, %18 : vector<8x512xf32>
    %20 = arith.truncf %19 : vector<8x512xf32> to vector<8x512xbf16>
    %c0_14 = arith.constant 0 : index
    %c0_15 = arith.constant 0 : index
    %21 = vector.load %arg6[%c0_14, %c0_15] : memref<512x512xbf16, #tpu.memory_space<vmem>>, vector<512x512xbf16>
    %cst_16 = arith.constant dense<0.000000e+00> : vector<8x512xf32>
    %22 = tpu.matmul %20, %21, %cst_16 {dimension_numbers = #tpu.dot_dimension_numbers<[1], [0], [0], [1], [0, 0, 1, 1], [], []>} : vector<8x512xbf16>, vector<512x512xbf16>, vector<8x512xf32> -> vector<8x512xf32>
    %23 = vector.broadcast %2 : vector<1x512xf32> to vector<8x512xf32>
    %24 = arith.addf %22, %23 : vector<8x512xf32>
    %cst_17 = arith.constant 0.000000e+00 : f32
    %25 = vector.broadcast %cst_17 : f32 to vector<8x512xf32>
    %26 = arith.maximumf %24, %25 : vector<8x512xf32>
    %27 = arith.truncf %26 : vector<8x512xf32> to vector<8x512xbf16>
    %c0_18 = arith.constant 0 : index
    %c0_19 = arith.constant 0 : index
    %28 = vector.load %arg7[%c0_18, %c0_19] : memref<512x128xbf16, #tpu.memory_space<vmem>>, vector<512x128xbf16>
    %cst_20 = arith.constant dense<0.000000e+00> : vector<8x128xf32>
    %29 = tpu.matmul %27, %28, %cst_20 {dimension_numbers = #tpu.dot_dimension_numbers<[1], [0], [0], [1], [0, 0, 1, 1], [], []>} : vector<8x512xbf16>, vector<512x128xbf16>, vector<8x128xf32> -> vector<8x128xf32>
    %30 = vector.broadcast %3 : vector<1x128xf32> to vector<8x128xf32>
    %31 = arith.addf %29, %30 : vector<8x128xf32>
    %32 = tpu.iota {dimensions = array<i32: 1>} : vector<8x128xi32>
    %c10_i32 = arith.constant 10 : i32
    %33 = vector.broadcast %c10_i32 : i32 to vector<8x128xi32>
    %34 = arith.cmpi slt, %32, %33 : vector<8x128xi32>
    %cst_21 = arith.constant -1.000000e+30 : f32
    %35 = vector.broadcast %cst_21 : f32 to vector<8x128xf32>
    %36 = arith.select %34, %31, %35 : vector<8x128xi1>, vector<8x128xf32>
    %cst_22 = arith.constant dense<0xFF800000> : vector<8xf32>
    %37 = vector.multi_reduction <maximumf>, %36, %cst_22 [1] : vector<8x128xf32> to vector<8xf32>
    %38 = vector.shape_cast %37 : vector<8xf32> to vector<8x1xf32>
    %39 = vector.broadcast %38 : vector<8x1xf32> to vector<8x128xf32>
    %40 = arith.subf %36, %39 : vector<8x128xf32>
    %41 = math.exp %40 : vector<8x128xf32>
    %cst_23 = arith.constant 0.000000e+00 : f32
    %42 = vector.broadcast %cst_23 : f32 to vector<8x128xf32>
    %43 = arith.select %34, %41, %42 : vector<8x128xi1>, vector<8x128xf32>
    %cst_24 = arith.constant dense<0.000000e+00> : vector<8xf32>
    %44 = vector.multi_reduction <add>, %43, %cst_24 [1] : vector<8x128xf32> to vector<8xf32>
    %45 = vector.shape_cast %44 : vector<8xf32> to vector<8x1xf32>
    %46 = math.log %45 : vector<8x1xf32>
    %47 = vector.broadcast %46 : vector<8x1xf32> to vector<8x128xf32>
    %48 = arith.subf %40, %47 : vector<8x128xf32>
    %cst_25 = arith.constant 0.000000e+00 : f32
    %49 = vector.broadcast %cst_25 : f32 to vector<8x128xf32>
    %50 = arith.select %34, %48, %49 : vector<8x128xi1>, vector<8x128xf32>
    %c0_26 = arith.constant 0 : index
    %c0_27 = arith.constant 0 : index
    %51 = vector.load %arg3[%c0_26, %c0_27] : memref<8x128xf32, #tpu.memory_space<vmem>>, vector<8x128xf32>
    %52 = arith.mulf %51, %50 : vector<8x128xf32>
    %cst_28 = arith.constant dense<0.000000e+00> : vector<8xf32>
    %53 = vector.multi_reduction <add>, %52, %cst_28 [1] : vector<8x128xf32> to vector<8xf32>
    %54 = vector.shape_cast %53 : vector<8xf32> to vector<8x1xf32>
    %cst_29 = arith.constant 0.000000e+00 : f32
    %55 = vector.broadcast %cst_29 : f32 to vector<8x1xf32>
    %56 = arith.subf %55, %54 : vector<8x1xf32>
    %57 = arith.sitofp %32 : vector<8x128xi32> to vector<8x128xf32>
    %58 = vector.broadcast %38 : vector<8x1xf32> to vector<8x128xf32>
    %59 = arith.cmpf oge, %36, %58 : vector<8x128xf32>
    %cst_30 = arith.constant 1.280000e+02 : f32
    %60 = vector.broadcast %cst_30 : f32 to vector<8x128xf32>
    %61 = arith.select %59, %57, %60 : vector<8x128xi1>, vector<8x128xf32>
    %cst_31 = arith.constant dense<0x7F800000> : vector<8xf32>
    %62 = vector.multi_reduction <minimumf>, %61, %cst_31 [1] : vector<8x128xf32> to vector<8xf32>
    %63 = vector.shape_cast %62 : vector<8xf32> to vector<8x1xf32>
    %c10_i32_32 = arith.constant 10 : i32
    %64 = vector.broadcast %c10_i32_32 : i32 to vector<8x128xi32>
    %65 = arith.cmpi eq, %32, %64 : vector<8x128xi32>
    %cst_33 = arith.constant 0.000000e+00 : f32
    %66 = vector.broadcast %cst_33 : f32 to vector<8x128xf32>
    %67 = arith.select %65, %51, %66 : vector<8x128xi1>, vector<8x128xf32>
    %cst_34 = arith.constant dense<0.000000e+00> : vector<8xf32>
    %68 = vector.multi_reduction <add>, %67, %cst_34 [1] : vector<8x128xf32> to vector<8xf32>
    %69 = vector.shape_cast %68 : vector<8xf32> to vector<8x1xf32>
    %70 = arith.cmpf oeq, %63, %69 : vector<8x1xf32>
    %71 = arith.extui %70 : vector<8x1xi1> to vector<8x1xi32>
    %72 = arith.sitofp %71 : vector<8x1xi32> to vector<8x1xf32>
    %cst_35 = arith.constant 1.000000e+00 : f32
    %73 = vector.broadcast %cst_35 : f32 to vector<8x1xf32>
    %74 = arith.subf %73, %72 : vector<8x1xf32>
    %c10_i32_36 = arith.constant 10 : i32
    %75 = vector.broadcast %c10_i32_36 : i32 to vector<8x128xi32>
    %76 = arith.cmpi eq, %32, %75 : vector<8x128xi32>
    %c11_i32 = arith.constant 11 : i32
    %77 = vector.broadcast %c11_i32 : i32 to vector<8x128xi32>
    %78 = arith.cmpi eq, %32, %77 : vector<8x128xi32>
    %79 = vector.shape_cast %74 : vector<8x1xf32> to vector<8x1xf32>
    %80 = vector.broadcast %79 : vector<8x1xf32> to vector<8x128xf32>
    %81 = arith.select %78, %80, %50 : vector<8x128xi1>, vector<8x128xf32>
    %82 = vector.shape_cast %56 : vector<8x1xf32> to vector<8x1xf32>
    %83 = vector.broadcast %82 : vector<8x1xf32> to vector<8x128xf32>
    %84 = arith.select %76, %83, %81 : vector<8x128xi1>, vector<8x128xf32>
    %c0_37 = arith.constant 0 : index
    %c0_38 = arith.constant 0 : index
    %c0_39 = arith.constant 0 : index
    %85 = vector.load %arg9[%c0_37, %c0_38, %c0_39] : memref<1x8x128xf32, #tpu.memory_space<vmem>>, vector<1x8x128xf32>
    %86 = vector.shape_cast %85 : vector<1x8x128xf32> to vector<8x128xf32>
    %87 = vector.shape_cast %84 : vector<8x128xf32> to vector<1x8x128xf32>
    tpu.vector_store %arg9[%c0_37, %c0_38, %c0_39], %87 {strides = array<i32>} : memref<1x8x128xf32, #tpu.memory_space<vmem>>, vector<1x8x128xf32>,
    return
  }
  func.func @transform_0(%arg0: i32, %arg1: i32) -> (i32, i32, i32) {
    %c0_i32 = arith.constant 0 : i32
    %c0_i32_0 = arith.constant 0 : i32
    return %arg1, %arg0, %c0_i32 : i32, i32, i32
  }
  func.func @transform_1(%arg0: i32, %arg1: i32) -> (i32, i32) {
    %c0_i32 = arith.constant 0 : i32
    %c0_i32_0 = arith.constant 0 : i32
    return %arg0, %c0_i32 : i32, i32
  }
  func.func @transform_2(%arg0: i32, %arg1: i32) -> (i32, i32) {
    %c0_i32 = arith.constant 0 : i32
    %c0_i32_0 = arith.constant 0 : i32
    %c0_i32_1 = arith.constant 0 : i32
    return %c0_i32, %c0_i32_0 : i32, i32
  }
  func.func @transform_3(%arg0: i32, %arg1: i32) -> (i32, i32) {
    %c0_i32 = arith.constant 0 : i32
    %c0_i32_0 = arith.constant 0 : i32
    %c0_i32_1 = arith.constant 0 : i32
    return %c0_i32, %c0_i32_0 : i32, i32
  }
  func.func @transform_4(%arg0: i32, %arg1: i32) -> (i32, i32) {
    %c0_i32 = arith.constant 0 : i32
    %c0_i32_0 = arith.constant 0 : i32
    %c0_i32_1 = arith.constant 0 : i32
    return %c0_i32, %c0_i32_0 : i32, i32
  }
  func.func @transform_5(%arg0: i32, %arg1: i32) -> (i32, i32) {
    %c0_i32 = arith.constant 0 : i32
    %c0_i32_0 = arith.constant 0 : i32
    %c0_i32_1 = arith.constant 0 : i32
    return %c0_i32, %c0_i32_0 : i32, i32
  }
  func.func @transform_6(%arg0: i32, %arg1: i32) -> (i32, i32) {
    %c0_i32 = arith.constant 0 : i32
    %c0_i32_0 = arith.constant 0 : i32
    %c0_i32_1 = arith.constant 0 : i32
    return %c0_i32, %c0_i32_0 : i32, i32
  }
  func.func @transform_7(%arg0: i32, %arg1: i32) -> (i32, i32, i32) {
    %c0_i32 = arith.constant 0 : i32
    %c0_i32_0 = arith.constant 0 : i32
    return %arg1, %arg0, %c0_i32 : i32, i32, i32
  }
}

</mosaic_0001>

<llo_original>
// kernel: tpu_custom_call.1
$region0: #{tpu_custom_call.1}
  #allocation0 [shape = 'u32[]', space=smem, size = 0x4, offset = 0x4, fixed_abs, tag = 'smem constant byte address 0x4 - core index']
  #allocation1 [shape = 'u32[144,128]{1,0:T(1,128)}', space=vmem, size = 0x12000, scoped, tag = 'internal scratch']
  %s0 = inlined_call_operand.hbm [shape: f32[2,8,10], index: 0, kind: input, shape index: {}]
  %s1 = inlined_call_operand.hbm [shape: f32[8,128], index: 1, kind: input, shape index: {}]
  %s2 = inlined_call_operand.hbm [shape: bf16[10,512], index: 2, kind: input, shape index: {}]
  %s3 = inlined_call_operand.hbm [shape: bf16[512,512], index: 3, kind: input, shape index: {}]
  %s4 = inlined_call_operand.hbm [shape: bf16[512,512], index: 4, kind: input, shape index: {}]
  %s5 = inlined_call_operand.hbm [shape: bf16[512,128], index: 5, kind: input, shape index: {}]
  %s6 = inlined_call_operand.hbm [shape: f32[8,512], index: 6, kind: input, shape index: {}]
  %s7 = inlined_call_operand.hbm [shape: f32[2,8,128], index: 7, kind: output, shape index: {}]
  %s8 = sld [smem:[#allocation0]]
  $region89: #{tpu_custom_call.1} parent=0
    _
  %s10 = ssub.s32 1, %s8
  %s11 = scalar_select 0, %s10, %s8
  $region1: #{tpu_custom_call.1} parent=0
    #allocation2 [shape = 'u8[8192]{0}', space=vmem, size = 0x2000, scoped, tag = 'input window, operand 0']
    #allocation3 [shape = 's32[2]{0}', space=sflag, size = 0x8, scoped, tag = 'scoped memory for tpu_custom_call.1']
    #allocation4 [shape = 's32[2]{0}', space=sflag, size = 0x8, scoped, tag = 'scoped memory for tpu_custom_call.1']
    #allocation5 [shape = 'u8[4096]{0}', space=vmem, size = 0x1000, scoped, tag = 'input window, operand 1, single buffered']
    #allocation6 [shape = 's32[1]{0}', space=sflag, size = 0x4, scoped, tag = 'scoped memory for tpu_custom_call.1']
    #allocation7 [shape = 'u8[16384]{0}', space=vmem, size = 0x4000, scoped, tag = 'input window, operand 2, single buffered']
    #allocation8 [shape = 'u8[524288]{0}', space=vmem, size = 0x80000, scoped, tag = 'input window, operand 3, single buffered']
    #allocation9 [shape = 's32[1]{0}', space=sflag, size = 0x4, scoped, tag = 'scoped memory for tpu_custom_call.1']
    #allocation10 [shape = 'u8[524288]{0}', space=vmem, size = 0x80000, scoped, tag = 'input window, operand 4, single buffered']
    #allocation11 [shape = 'u8[131072]{0}', space=vmem, size = 0x20000, scoped, tag = 'input window, operand 5, single buffered']
    #allocation12 [shape = 's32[1]{0}', space=sflag, size = 0x4, scoped, tag = 'scoped memory for tpu_custom_call.1']
    #allocation13 [shape = 'u8[16384]{0}', space=vmem, size = 0x4000, scoped, tag = 'input window, operand 6, single buffered']
    #allocation14 [shape = 'u8[8192]{0}', space=vmem, size = 0x2000, scoped, tag = 'output window, operand 0']
    %12 = vsyncpa [#allocation3], 0
    %s13 = scalar_lea.sflag [#allocation3], 1
    %14 = vsyncpa %s13, 0
    %15 = vsyncpa [#allocation6], 0
    %16 = vsyncpa [#allocation9], 0
    %17 = vsyncpa [#allocation12], 0
    %18 = vsyncpa [#allocation4], 0
    %s19 = scalar_lea.sflag [#allocation4], 1
    %20 = vsyncpa %s19, 0
    loop: start=0, step=1, limit=4
    $region2: #{tpu_custom_call.1} parent=1 // loop_pre_header
      _
    $region3: #{tpu_custom_call.1} parent=1 // loop_header
      %s22 = sphi 0, %s26
      %p23 = scmp.ge.s32.totalorder %s22, 4
      %s29 = sphi 0, %s41
      %s30 = sphi 0, %s37
      %s31 = sphi 0, %s29
      %s32 = sphi 0, %s30
      %s33 = sphi 0, %s31
      %s34 = sphi 0, %s32
      %s46 = sphi 0, %s48
      %s49 = sphi 0, %s46
      %s50 = sphi 0, %s49
      %s66 = sphi 0, %s50
      %s72 = sphi 0, %s74
      %s75 = sphi 0, %s72
      %s76 = sphi 0, %s75
      %s92 = sphi 0, %s76
      %s96 = sphi 0, %s96
      %s98 = sphi 0, %s96
      %s99 = sphi 0, %s98
      %s113 = sphi 0, %s99
      %s117 = sphi 0, %s117
      %s119 = sphi 0, %s117
      %s120 = sphi 0, %s119
      %s134 = sphi 0, %s120
      %s138 = sphi 0, %s138
      %s140 = sphi 0, %s138
      %s141 = sphi 0, %s140
      %s155 = sphi 0, %s141
      %s159 = sphi 0, %s159
      %s161 = sphi 0, %s159
      %s162 = sphi 0, %s161
      %s176 = sphi 0, %s162
      %s180 = sphi 0, %s180
      %s182 = sphi 0, %s180
      %s183 = sphi 0, %s182
      %s197 = sphi 0, %s183
      %s205 = sphi 0, %s207
      %s208 = sphi 0, %s205
      %s209 = sphi 0, %s208
      %s225 = sphi 0, %s209
    $region4: #{tpu_custom_call.1} parent=1 // loop_header_branch
      %25 = sbr.rel (%p23) target = $region8
    $region5: #{tpu_custom_call.1} parent=1 // loop_body
      %s27 = ssub.s32 %s22, 1
      %s28 = ssub.s32 %s22, 2
      %s35 = sadd.s32 1, %s30
      %p36 = scmp.ge.s32.totalorder %s35, 2
      %s37 = scalar_select %p36, 0, %s35
      %s38 = sadd.s32 1, %s29
      %s39 = scalar_select %p36, %s38, %s29
      %p40 = scmp.ge.s32.totalorder %s39, 1
      %s41 = scalar_select %p40, 0, %s39
      %s42 = ssub.s32 %s30, %s37
      %s43 = ssub.s32 %s29, %s41
      %s44 = sor.u32 %s42, %s43
      %p45 = scmp.eq.s32.totalorder %s44, 0
      %s47 = sadd.s32 %s46, 1
      %s48 = scalar_select %p45, %s46, %s47
      %p51 = pneg %p45
      %p52 = scmp.eq.s32.totalorder %s22, 1
      %p53 = por %p51, %p52
      %p54 = scmp.ne.s32.totalorder %s46, %s49
      %p55 = scmp.eq.s32.totalorder %s22, 0
      %p56 = por %p54, %p55
      %p57 = scmp.ne.s32.totalorder %s46, %s49
      %p58 = scmp.eq.s32.totalorder %s27, 1
      %p59 = por %p57, %p58
      %p60 = scmp.ne.s32.totalorder %s49, %s50
      %p61 = scmp.eq.s32.totalorder %s27, 0
      %p62 = por %p60, %p61
      %p63 = scmp.ne.s32.totalorder %s49, %s50
      %p64 = scmp.eq.s32.totalorder %s28, 1
      %p65 = por %p63, %p64
      %p67 = scmp.ne.s32.totalorder %s50, %s66
      %p68 = scmp.eq.s32.totalorder %s28, 0
      %p69 = por %p67, %p68
      %s70 = ssub.s32 %s29, %s41
      %p71 = scmp.eq.s32.totalorder %s70, 0
      %s73 = sadd.s32 %s72, 1
      %s74 = scalar_select %p71, %s72, %s73
      %p77 = pneg %p71
      %p78 = scmp.eq.s32.totalorder %s22, 1
      %p79 = por %p77, %p78
      %p80 = scmp.ne.s32.totalorder %s72, %s75
      %p81 = scmp.eq.s32.totalorder %s22, 0
      %p82 = por %p80, %p81
      %p83 = scmp.ne.s32.totalorder %s72, %s75
      %p84 = scmp.eq.s32.totalorder %s27, 1
      %p85 = por %p83, %p84
      %p86 = scmp.ne.s32.totalorder %s75, %s76
      %p87 = scmp.eq.s32.totalorder %s27, 0
      %p88 = por %p86, %p87
      %p89 = scmp.ne.s32.totalorder %s75, %s76
      %p90 = scmp.eq.s32.totalorder %s28, 1
      %p91 = por %p89, %p90
      %p93 = scmp.ne.s32.totalorder %s76, %s92
      %p94 = scmp.eq.s32.totalorder %s28, 0
      %p95 = por %p93, %p94
      %s97 = sadd.s32 %s96, 1
      %p100 = scmp.eq.s32.totalorder %s22, 1
      %p101 = scmp.ne.s32.totalorder %s96, %s98
      %p102 = scmp.eq.s32.totalorder %s22, 0
      %p103 = por %p101, %p102
      %p104 = scmp.ne.s32.totalorder %s96, %s98
      %p105 = scmp.eq.s32.totalorder %s27, 1
      %p106 = por %p104, %p105
      %p107 = scmp.ne.s32.totalorder %s98, %s99
      %p108 = scmp.eq.s32.totalorder %s27, 0
      %p109 = por %p107, %p108
      %p110 = scmp.ne.s32.totalorder %s98, %s99
      %p111 = scmp.eq.s32.totalorder %s28, 1
      %p112 = por %p110, %p111
      %p114 = scmp.ne.s32.totalorder %s99, %s113
      %p115 = scmp.eq.s32.totalorder %s28, 0
      %p116 = por %p114, %p115
      %s118 = sadd.s32 %s117, 1
      %p121 = scmp.eq.s32.totalorder %s22, 1
      %p122 = scmp.ne.s32.totalorder %s117, %s119
      %p123 = scmp.eq.s32.totalorder %s22, 0
      %p124 = por %p122, %p123
      %p125 = scmp.ne.s32.totalorder %s117, %s119
      %p126 = scmp.eq.s32.totalorder %s27, 1
      %p127 = por %p125, %p126
      %p128 = scmp.ne.s32.totalorder %s119, %s120
      %p129 = scmp.eq.s32.totalorder %s27, 0
      %p130 = por %p128, %p129
      %p131 = scmp.ne.s32.totalorder %s119, %s120
      %p132 = scmp.eq.s32.totalorder %s28, 1
      %p133 = por %p131, %p132
      %p135 = scmp.ne.s32.totalorder %s120, %s134
      %p136 = scmp.eq.s32.totalorder %s28, 0
      %p137 = por %p135, %p136
      %s139 = sadd.s32 %s138, 1
      %p142 = scmp.eq.s32.totalorder %s22, 1
      %p143 = scmp.ne.s32.totalorder %s138, %s140
      %p144 = scmp.eq.s32.totalorder %s22, 0
      %p145 = por %p143, %p144
      %p146 = scmp.ne.s32.totalorder %s138, %s140
      %p147 = scmp.eq.s32.totalorder %s27, 1
      %p148 = por %p146, %p147
      %p149 = scmp.ne.s32.totalorder %s140, %s141
      %p150 = scmp.eq.s32.totalorder %s27, 0
      %p151 = por %p149, %p150
      %p152 = scmp.ne.s32.totalorder %s140, %s141
      %p153 = scmp.eq.s32.totalorder %s28, 1
      %p154 = por %p152, %p153
      %p156 = scmp.ne.s32.totalorder %s141, %s155
      %p157 = scmp.eq.s32.totalorder %s28, 0
      %p158 = por %p156, %p157
      %s160 = sadd.s32 %s159, 1
      %p163 = scmp.eq.s32.totalorder %s22, 1
      %p164 = scmp.ne.s32.totalorder %s159, %s161
      %p165 = scmp.eq.s32.totalorder %s22, 0
      %p166 = por %p164, %p165
      %p167 = scmp.ne.s32.totalorder %s159, %s161
      %p168 = scmp.eq.s32.totalorder %s27, 1
      %p169 = por %p167, %p168
      %p170 = scmp.ne.s32.totalorder %s161, %s162
      %p171 = scmp.eq.s32.totalorder %s27, 0
      %p172 = por %p170, %p171
      %p173 = scmp.ne.s32.totalorder %s161, %s162
      %p174 = scmp.eq.s32.totalorder %s28, 1
      %p175 = por %p173, %p174
      %p177 = scmp.ne.s32.totalorder %s162, %s176
      %p178 = scmp.eq.s32.totalorder %s28, 0
      %p179 = por %p177, %p178
      %s181 = sadd.s32 %s180, 1
      %p184 = scmp.eq.s32.totalorder %s22, 1
      %p185 = scmp.ne.s32.totalorder %s180, %s182
      %p186 = scmp.eq.s32.totalorder %s22, 0
      %p187 = por %p185, %p186
      %p188 = scmp.ne.s32.totalorder %s180, %s182
      %p189 = scmp.eq.s32.totalorder %s27, 1
      %p190 = por %p188, %p189
      %p191 = scmp.ne.s32.totalorder %s182, %s183
      %p192 = scmp.eq.s32.totalorder %s27, 0
      %p193 = por %p191, %p192
      %p194 = scmp.ne.s32.totalorder %s182, %s183
      %p195 = scmp.eq.s32.totalorder %s28, 1
      %p196 = por %p194, %p195
      %p198 = scmp.ne.s32.totalorder %s183, %s197
      %p199 = scmp.eq.s32.totalorder %s28, 0
      %p200 = por %p198, %p199
      %s201 = ssub.s32 %s30, %s37
      %s202 = ssub.s32 %s29, %s41
      %s203 = sor.u32 %s201, %s202
      %p204 = scmp.eq.s32.totalorder %s203, 0
      %s206 = sadd.s32 %s205, 1
      %s207 = scalar_select %p204, %s205, %s206
      %p210 = pneg %p204
      %p211 = scmp.eq.s32.totalorder %s22, 1
      %p212 = por %p210, %p211
      %p213 = scmp.ne.s32.totalorder %s205, %s208
      %p214 = scmp.eq.s32.totalorder %s22, 0
      %p215 = por %p213, %p214
      %p216 = scmp.ne.s32.totalorder %s205, %s208
      %p217 = scmp.eq.s32.totalorder %s27, 1
      %p218 = por %p216, %p217
      %p219 = scmp.ne.s32.totalorder %s208, %s209
      %p220 = scmp.eq.s32.totalorder %s27, 0
      %p221 = por %p219, %p220
      %p222 = scmp.ne.s32.totalorder %s208, %s209
      %p223 = scmp.eq.s32.totalorder %s28, 1
      %p224 = por %p222, %p223
      %p226 = scmp.ne.s32.totalorder %s209, %s225
      %p227 = scmp.eq.s32.totalorder %s28, 0
      %p228 = por %p226, %p227
      %p229 = scmp.le.s32.totalorder 1, %s22
      %p230 = scmp.lt.s32.totalorder %s22, 3
      %p231 = pnand %p229, %p230
      %p232 = pneg %p231
      // Predicated region
      $region9: #{tpu_custom_call.1} parent=5 // pred_check
        _
      $region10: #{tpu_custom_call.1} parent=5 // pred_check_branch
        %234 = sbr.rel (%p231) target = $region12
      $region11: #{tpu_custom_call.1} parent=5 // pred_region
        %s235 = ssub.s32 %s22, 1
        // Predicated region
        $region13: #{tpu_custom_call.1} parent=11 // pred_check
          %p236 = pneg %p88
        $region14: #{tpu_custom_call.1} parent=11 // pred_check_branch
          %238 = sbr.rel (%p236) target = $region16
        $region15: #{tpu_custom_call.1} parent=11 // pred_region
          %s240 = ssub.s32 128, 128
          %241 = vsyncadd [#allocation6], %s240
          %s242 = smul.addr %s31, 128
          %s243 = scalar_lea.hbm %s1, %s242
          %s245 = sshll.u32 [#allocation5], 4
          %s246 = int_to_ptr.vmem [resolvable:$true] %s245
          %248 = dma.hbm_to_vmem [thread:$0]  %s243, 128, %s246, [#allocation6]
        $region16: #{tpu_custom_call.1} parent=11 // pred_fallthru
          _
        // Predicated region
        $region17: #{tpu_custom_call.1} parent=11 // pred_check
          %p249 = pneg %p109
        $region18: #{tpu_custom_call.1} parent=11 // pred_check_branch
          %251 = sbr.rel (%p249) target = $region20
        $region19: #{tpu_custom_call.1} parent=11 // pred_region
          %s253 = ssub.s32 512, 512
          %254 = vsyncadd [#allocation6], %s253
          %s255 = sshll.u32 [#allocation7], 4
          %s256 = int_to_ptr.vmem [resolvable:$true] %s255
          %261 = dma.hbm_to_vmem [thread:$0]  %s2, 512, %s256, [#allocation6], 256, 256, 16
        $region20: #{tpu_custom_call.1} parent=11 // pred_fallthru
          _
        // Predicated region
        $region21: #{tpu_custom_call.1} parent=11 // pred_check
          %p262 = pneg %p130
        $region22: #{tpu_custom_call.1} parent=11 // pred_check_branch
          %264 = sbr.rel (%p262) target = $region24
        $region23: #{tpu_custom_call.1} parent=11 // pred_region
          %s266 = ssub.s32 16384, 16384
          %267 = vsyncadd [#allocation9], %s266
          %s268 = sshll.u32 [#allocation8], 4
          %s269 = int_to_ptr.vmem [resolvable:$true] %s268
          %274 = dma.hbm_to_vmem [thread:$0]  %s3, 16384, %s269, [#allocation9], 256, 256, 16
        $region24: #{tpu_custom_call.1} parent=11 // pred_fallthru
          _
        // Predicated region
        $region25: #{tpu_custom_call.1} parent=11 // pred_check
          %p275 = pneg %p151
        $region26: #{tpu_custom_call.1} parent=11 // pred_check_branch
          %277 = sbr.rel (%p275) target = $region28
        $region27: #{tpu_custom_call.1} parent=11 // pred_region
          %s279 = ssub.s32 16384, 16384
          %280 = vsyncadd [#allocation9], %s279
          %s281 = sshll.u32 [#allocation10], 4
          %s282 = int_to_ptr.vmem [resolvable:$true] %s281
          %287 = dma.hbm_to_vmem [thread:$0]  %s4, 16384, %s282, [#allocation9], 256, 256, 16
        $region28: #{tpu_custom_call.1} parent=11 // pred_fallthru
          _
        // Predicated region
        $region29: #{tpu_custom_call.1} parent=11 // pred_check
          %p288 = pneg %p172
        $region30: #{tpu_custom_call.1} parent=11 // pred_check_branch
          %290 = sbr.rel (%p288) target = $region32
        $region31: #{tpu_custom_call.1} parent=11 // pred_region
          %s292 = ssub.s32 4096, 4096
          %293 = vsyncadd [#allocation12], %s292
          %s294 = sshll.u32 [#allocation11], 4
          %s295 = int_to_ptr.vmem [resolvable:$true] %s294
          %300 = dma.hbm_to_vmem [thread:$0]  %s5, 4096, %s295, [#allocation12], 64, 64, 4
        $region32: #{tpu_custom_call.1} parent=11 // pred_fallthru
          _
        // Predicated region
        $region33: #{tpu_custom_call.1} parent=11 // pred_check
          %p301 = pneg %p193
        $region34: #{tpu_custom_call.1} parent=11 // pred_check_branch
          %303 = sbr.rel (%p301) target = $region36
        $region35: #{tpu_custom_call.1} parent=11 // pred_region
          %s305 = ssub.s32 512, 512
          %306 = vsyncadd [#allocation12], %s305
          %s308 = sshll.u32 [#allocation13], 4
          %s309 = int_to_ptr.vmem [resolvable:$true] %s308
          %311 = dma.hbm_to_vmem [thread:$0]  %s6, 512, %s309, [#allocation12]
        $region36: #{tpu_custom_call.1} parent=11 // pred_fallthru
          _
      $region12: #{tpu_custom_call.1} parent=5 // pred_fallthru
        _
      %p312 = scmp.lt.s32.totalorder %s22, 2
      // Predicated region
      $region37: #{tpu_custom_call.1} parent=5 // pred_check
        %p313 = pneg %p312
      $region38: #{tpu_custom_call.1} parent=5 // pred_check_branch
        %315 = sbr.rel (%p313) target = $region40
      $region39: #{tpu_custom_call.1} parent=5 // pred_region
        // Predicated region
        $region41: #{tpu_custom_call.1} parent=39 // pred_check
          %p316 = pneg %p56
        $region42: #{tpu_custom_call.1} parent=39 // pred_check_branch
          %318 = sbr.rel (%p316) target = $region44
        $region43: #{tpu_custom_call.1} parent=39 // pred_region
          %s319 = sand.u32 %s46, 1
          %s320 = scalar_lea.sflag [#allocation3], %s319
          %s321 = sand.u32 %s46, 1
          %s322 = smul.addr %s321, 8
          %s323 = scalar_lea.vmem [#allocation2], %s322
          %s325 = ssub.s32 128, 128
          %326 = vsyncadd %s320, %s325
          %s327 = sadd.s32 %s29, %s30
          %s328 = smul.addr %s327, 128
          %s329 = scalar_lea.hbm %s0, %s328
          %s331 = sshll.u32 %s323, 4
          %s332 = int_to_ptr.vmem [resolvable:$true] %s331
          %334 = dma.hbm_to_vmem [thread:$0]  %s329, 128, %s332, %s320
        $region44: #{tpu_custom_call.1} parent=39 // pred_fallthru
          _
      $region40: #{tpu_custom_call.1} parent=5 // pred_fallthru
        _
      %p335 = scmp.le.s32.totalorder 1, %s22
      %p336 = scmp.lt.s32.totalorder %s22, 3
      %p337 = pnand %p335, %p336
      %p338 = pneg %p337
      // Predicated region
      $region45: #{tpu_custom_call.1} parent=5 // pred_check
        _
      $region46: #{tpu_custom_call.1} parent=5 // pred_check_branch
        %340 = sbr.rel (%p337) target = $region48
      $region47: #{tpu_custom_call.1} parent=5 // pred_region
        %s341 = ssub.s32 %s22, 1
        %s342 = sand.u32 %s49, 1
        %s343 = scalar_lea.sflag [#allocation3], %s342
        %s344 = sand.u32 %s49, 1
        %s345 = smul.addr %s344, 8
        %s346 = scalar_lea.vmem [#allocation2], %s345
        // Predicated region
        $region49: #{tpu_custom_call.1} parent=47 // pred_check
          %p347 = pneg %p62
        $region50: #{tpu_custom_call.1} parent=47 // pred_check_branch
          %349 = sbr.rel (%p347) target = $region52
        $region51: #{tpu_custom_call.1} parent=47 // pred_region
          %350 = dma.done %s343, 128
        $region52: #{tpu_custom_call.1} parent=47 // pred_fallthru
          _
        // Predicated region
        $region53: #{tpu_custom_call.1} parent=47 // pred_check
          %p351 = pneg %p88
        $region54: #{tpu_custom_call.1} parent=47 // pred_check_branch
          %353 = sbr.rel (%p351) target = $region56
        $region55: #{tpu_custom_call.1} parent=47 // pred_region
          %354 = dma.done [#allocation6], 128
        $region56: #{tpu_custom_call.1} parent=47 // pred_fallthru
          _
        // Predicated region
        $region57: #{tpu_custom_call.1} parent=47 // pred_check
          %p355 = pneg %p109
        $region58: #{tpu_custom_call.1} parent=47 // pred_check_branch
          %357 = sbr.rel (%p355) target = $region60
        $region59: #{tpu_custom_call.1} parent=47 // pred_region
          %358 = dma.done [#allocation6], 512
        $region60: #{tpu_custom_call.1} parent=47 // pred_fallthru
          _
        // Predicated region
        $region61: #{tpu_custom_call.1} parent=47 // pred_check
          %p359 = pneg %p130
        $region62: #{tpu_custom_call.1} parent=47 // pred_check_branch
          %361 = sbr.rel (%p359) target = $region64
        $region63: #{tpu_custom_call.1} parent=47 // pred_region
          %362 = dma.done [#allocation9], 16384
        $region64: #{tpu_custom_call.1} parent=47 // pred_fallthru
          _
        // Predicated region
        $region65: #{tpu_custom_call.1} parent=47 // pred_check
          %p363 = pneg %p151
        $region66: #{tpu_custom_call.1} parent=47 // pred_check_branch
          %365 = sbr.rel (%p363) target = $region68
        $region67: #{tpu_custom_call.1} parent=47 // pred_region
          %366 = dma.done [#allocation9], 16384
        $region68: #{tpu_custom_call.1} parent=47 // pred_fallthru
          _
        // Predicated region
        $region69: #{tpu_custom_call.1} parent=47 // pred_check
          %p367 = pneg %p172
        $region70: #{tpu_custom_call.1} parent=47 // pred_check_branch
          %369 = sbr.rel (%p367) target = $region72
        $region71: #{tpu_custom_call.1} parent=47 // pred_region
          %370 = dma.done [#allocation12], 4096
        $region72: #{tpu_custom_call.1} parent=47 // pred_fallthru
          _
        // Predicated region
        $region73: #{tpu_custom_call.1} parent=47 // pred_check
          %p371 = pneg %p193
        $region74: #{tpu_custom_call.1} parent=47 // pred_check_branch
          %373 = sbr.rel (%p371) target = $region76
        $region75: #{tpu_custom_call.1} parent=47 // pred_region
          %374 = dma.done [#allocation12], 512
        $region76: #{tpu_custom_call.1} parent=47 // pred_fallthru
          _
        %s375 = sand.u32 %s49, 1
        %s376 = scalar_lea.sflag [#allocation3], %s375
        %s377 = sand.u32 %s49, 1
        %s378 = smul.addr %s377, 8
        %s379 = scalar_lea.vmem [#allocation2], %s378
        %p380 = pneg %p62
        %p381 = pneg %p59
        %p382 = pneg %p88
        %p383 = pneg %p85
        %p384 = pneg %p109
        %p385 = pneg %p106
        %p386 = pneg %p130
        %p387 = pneg %p127
        %p388 = pneg %p151
        %p389 = pneg %p148
        %p390 = pneg %p172
        %p391 = pneg %p169
        %p392 = pneg %p193
        %p393 = pneg %p190
        %p394 = pneg %p221
        %p395 = pneg %p218
        %s396 = sand.u32 %s208, 1
        %s397 = scalar_lea.sflag [#allocation4], %s396
        %s398 = sand.u32 %s208, 1
        %s399 = smul.addr %s398, 8
        %s400 = scalar_lea.vmem [#allocation14], %s399
        %v402 = vld [vmem:[#allocation13] ss:$8 sm:$0xf]
        %s403 = scalar_lea.vmem [#allocation13], 1
        %v404 = vld [vmem:[%s403] ss:$8 sm:$0xf]
        %s405 = scalar_lea.vmem [#allocation13], 2
        %v406 = vld [vmem:[%s405] ss:$8 sm:$0xf]
        %v407 = vld [vmem:[#allocation13 + $0x3] ss:$0 sm:$0xff]
        %v408 = vld [vmem:[%s346] sm:$0xff]
        %v409 = vpack.c.bf16 %v408, %v408
        %v410 = vld [vmem:[#allocation7] sm:$0xff]
        %v411 = vld [vmem:[#allocation7 + $0x8] sm:$0xff]
        %v412 = vld [vmem:[#allocation7 + $0x10] sm:$0x11]
        %v413 = vld [vmem:[#allocation7 + $0x18] sm:$0x11]
        %v415 = vlaneseq
        %v416 = vshrl.u32 %v415, 7
        %v417 = vsub.s32 0, %v416
        %v418 = vrot.slane %v402, %v417
        %v419 = vlaneseq
        %v420 = vshrl.u32 %v419, 7
        %v421 = vsub.s32 1, %v420
        %v422 = vrot.slane %v402, %v421
        %v423 = vlaneseq
        %v424 = vshrl.u32 %v423, 7
        %v425 = vsub.s32 2, %v424
        %v426 = vrot.slane %v402, %v425
        %v427 = vlaneseq
        %v428 = vshrl.u32 %v427, 7
        %v429 = vsub.s32 3, %v428
        %v430 = vrot.slane %v402, %v429
        %v439 = vunpack.c.l.b16 %v410
        %v440 = vunpack.c.h.b16 %v410
        %v441 = vunpack.c.l.b16 %v411
        %v442 = vunpack.c.h.b16 %v411
        %v443 = vunpack.c.l.b16 %v412
        %v444 = vunpack.c.h.b16 %v412
        %v445 = vunpack.c.l.b16 %v413
        %v446 = vunpack.c.h.b16 %v413
        %v447 = vpack.c.b16 %v443, %v439
        %v448 = vpack.c.b16 %v444, %v440
        %v449 = vpack.c.b16 %v445, %v441
        %v450 = vpack.c.b16 %v446, %v442
        %vm451 = vcmask 80896
        %v453 = vsel %vm451, %v409, 0
        %vm455 = vcmask 1044480
        %v457 = vsel %vm455, %v447, 0
        %v460 = vsel %vm455, %v448, 0
        %v463 = vsel %vm455, %v449, 0
        %v466 = vsel %vm455, %v450, 0
        %468 = vmatprep.subr.bf16.mxu0 %v460
        %469 = vmatpush1.bf16.msra.mxu0 %v457
        %470 = vmatprep.subr.bf16.mxu0 0
        %471 = vmatpush1.bf16.msra.mxu0 0
        %472 = vmatprep.subr.bf16.mxu0 0
        %473 = vmatpush1.bf16.msra.mxu0 0
        %474 = vmatprep.subr.bf16.mxu0 0
        %475 = vmatpush1.bf16.msra.mxu0 0
        %476 = vmatprep.subr.bf16.mxu0 0
        %477 = vmatpush1.bf16.msra.mxu0 0
        %478 = vmatprep.subr.bf16.mxu0 0
        %479 = vmatpush1.bf16.msra.mxu0 0
        %480 = vmatprep.subr.bf16.mxu0 0
        %481 = vmatpush1.bf16.msra.mxu0 0
        %482 = vmatprep.subr.bf16.mxu0 0
        %483 = vmatpush1.bf16.msra.mxu0 0
        %484 = vmatprep.subr.bf16.mxu0 0
        %485 = vmatpush1.bf16.msra.mxu0 0
        %486 = vmatprep.subr.bf16.mxu0 0
        %487 = vmatpush1.bf16.msra.mxu0 0
        %488 = vmatprep.subr.bf16.mxu0 0
        %489 = vmatpush1.bf16.msra.mxu0 0
        %490 = vmatprep.subr.bf16.mxu0 0
        %491 = vmatpush1.bf16.msra.mxu0 0
        %492 = vmatprep.subr.bf16.mxu0 0
        %493 = vmatpush1.bf16.msra.mxu0 0
        %494 = vmatprep.subr.bf16.mxu0 0
        %495 = vmatpush1.bf16.msra.mxu0 0
        %496 = vmatprep.subr.bf16.mxu0 0
        %497 = vmatpush1.bf16.msra.mxu0 0
        %498 = vmatprep.subr.bf16.mxu0 0
        %499 = vmatpush1.bf16.msra.mxu0 0
        %500 = vmatprep.mubr.bf16.mxu0 0
        %501 = vmatmul.mubr.bf16.gmra.mrb[0].mxu0 %v453
        %v502 = vpop.f32.mrb[0].mxu0
        %v503 = vadd.f32 %v418, %v502
        %v504 = vpop.f32.mrb[0].mxu0
        %v505 = vadd.f32 %v422, %v504
        %v506 = vpop.f32.mrb[0].mxu0
        %v507 = vpop.f32.mrb[0].mxu0
        %508 = vdwg.mxu0
        %509 = vmatprep.subr.bf16.mxu0 %v466
        %510 = vmatpush1.bf16.msra.mxu0 %v463
        %511 = vmatprep.subr.bf16.mxu0 0
        %512 = vmatpush1.bf16.msra.mxu0 0
        %513 = vmatprep.subr.bf16.mxu0 0
        %514 = vmatpush1.bf16.msra.mxu0 0
        %515 = vmatprep.subr.bf16.mxu0 0
        %516 = vmatpush1.bf16.msra.mxu0 0
        %517 = vmatprep.subr.bf16.mxu0 0
        %518 = vmatpush1.bf16.msra.mxu0 0
        %519 = vmatprep.subr.bf16.mxu0 0
        %520 = vmatpush1.bf16.msra.mxu0 0
        %521 = vmatprep.subr.bf16.mxu0 0
        %522 = vmatpush1.bf16.msra.mxu0 0
        %523 = vmatprep.subr.bf16.mxu0 0
        %524 = vmatpush1.bf16.msra.mxu0 0
        %525 = vmatprep.subr.bf16.mxu0 0
        %526 = vmatpush1.bf16.msra.mxu0 0
        %527 = vmatprep.subr.bf16.mxu0 0
        %528 = vmatpush1.bf16.msra.mxu0 0
        %529 = vmatprep.subr.bf16.mxu0 0
        %530 = vmatpush1.bf16.msra.mxu0 0
        %531 = vmatprep.subr.bf16.mxu0 0
        %532 = vmatpush1.bf16.msra.mxu0 0
        %533 = vmatprep.subr.bf16.mxu0 0
        %534 = vmatpush1.bf16.msra.mxu0 0
        %535 = vmatprep.subr.bf16.mxu0 0
        %536 = vmatpush1.bf16.msra.mxu0 0
        %537 = vmatprep.subr.bf16.mxu0 0
        %538 = vmatpush1.bf16.msra.mxu0 0
        %539 = vmatprep.subr.bf16.mxu0 0
        %540 = vmatpush1.bf16.msra.mxu0 0
        %541 = vmatprep.mubr.bf16.mxu0 0
        %542 = vmatmul.mubr.bf16.gmra.mrb[0].mxu0 %v453
        %v543 = vpop.f32.mrb[0].mxu0
        %v544 = vadd.f32 %v426, %v543
        %v545 = vpop.f32.mrb[0].mxu0
        %v546 = vadd.f32 %v430, %v545
        %v547 = vpop.f32.mrb[0].mxu0
        %v548 = vpop.f32.mrb[0].mxu0
        %549 = vdwg.mxu0
        %v550 = vmax.f32 %v503, 0.0
        %v551 = vmax.f32 %v505, 0.0
        %v552 = vmax.f32 %v544, 0.0
        %v553 = vmax.f32 %v546, 0.0
        %v554 = vpack.c.bf16 %v550, %v550
        %v555 = vpack.c.bf16 %v551, %v551
        %v556 = vpack.c.bf16 %v552, %v552
        %v557 = vpack.c.bf16 %v553, %v553
        %v558 = vld [vmem:[#allocation8] sm:$0xff]
        %v559 = vld [vmem:[#allocation8 + $0x8] sm:$0xff]
        %v560 = vld [vmem:[#allocation8 + $0x10] sm:$0xff]
        %v561 = vld [vmem:[#allocation8 + $0x18] sm:$0xff]
        %v562 = vld [vmem:[#allocation8 + $0x20] sm:$0xff]
        %v563 = vld [vmem:[#allocation8 + $0x28] sm:$0xff]
        %v564 = vld [vmem:[#allocation8 + $0x30] sm:$0xff]
        %v565 = vld [vmem:[#allocation8 + $0x38] sm:$0xff]
        %v566 = vld [vmem:[#allocation8 + $0x40] sm:$0xff]
        %v567 = vld [vmem:[#allocation8 + $0x48] sm:$0xff]
        %v568 = vld [vmem:[#allocation8 + $0x50] sm:$0xff]
        %v569 = vld [vmem:[#allocation8 + $0x58] sm:$0xff]
        %v570 = vld [vmem:[#allocation8 + $0x60] sm:$0xff]
        %v571 = vld [vmem:[#allocation8 + $0x68] sm:$0xff]
        %v572 = vld [vmem:[#allocation8 + $0x70] sm:$0xff]
        %v573 = vld [vmem:[#allocation8 + $0x78] sm:$0xff]
        %v574 = vld [vmem:[#allocation8 + $0x80] sm:$0xff]
        %v575 = vld [vmem:[#allocation8 + $0x88] sm:$0xff]
        %v576 = vld [vmem:[#allocation8 + $0x90] sm:$0xff]
        %v577 = vld [vmem:[#allocation8 + $0x98] sm:$0xff]
        %v578 = vld [vmem:[#allocation8 + $0xa0] sm:$0xff]
        %v579 = vld [vmem:[#allocation8 + $0xa8] sm:$0xff]
        %v580 = vld [vmem:[#allocation8 + $0xb0] sm:$0xff]
        %v581 = vld [vmem:[#allocation8 + $0xb8] sm:$0xff]
        %v582 = vld [vmem:[#allocation8 + $0xc0] sm:$0xff]
        %v583 = vld [vmem:[#allocation8 + $0xc8] sm:$0xff]
        %v584 = vld [vmem:[#allocation8 + $0xd0] sm:$0xff]
        %v585 = vld [vmem:[#allocation8 + $0xd8] sm:$0xff]
        %v586 = vld [vmem:[#allocation8 + $0xe0] sm:$0xff]
        %v587 = vld [vmem:[#allocation8 + $0xe8] sm:$0xff]
        %v588 = vld [vmem:[#allocation8 + $0xf0] sm:$0xff]
        %v589 = vld [vmem:[#allocation8 + $0xf8] sm:$0xff]
        %v590 = vld [vmem:[#allocation8 + $0x100] sm:$0xff]
        %v591 = vld [vmem:[#allocation8 + $0x108] sm:$0xff]
        %v592 = vld [vmem:[#allocation8 + $0x110] sm:$0xff]
        %v593 = vld [vmem:[#allocation8 + $0x118] sm:$0xff]
        %v594 = vld [vmem:[#allocation8 + $0x120] sm:$0xff]
        %v595 = vld [vmem:[#allocation8 + $0x128] sm:$0xff]
        %v596 = vld [vmem:[#allocation8 + $0x130] sm:$0xff]
        %v597 = vld [vmem:[#allocation8 + $0x138] sm:$0xff]
        %v598 = vld [vmem:[#allocation8 + $0x140] sm:$0xff]
        %v599 = vld [vmem:[#allocation8 + $0x148] sm:$0xff]
        %v600 = vld [vmem:[#allocation8 + $0x150] sm:$0xff]
        %v601 = vld [vmem:[#allocation8 + $0x158] sm:$0xff]
        %v602 = vld [vmem:[#allocation8 + $0x160] sm:$0xff]
        %v603 = vld [vmem:[#allocation8 + $0x168] sm:$0xff]
        %v604 = vld [vmem:[#allocation8 + $0x170] sm:$0xff]
        %v605 = vld [vmem:[#allocation8 + $0x178] sm:$0xff]
        %v606 = vld [vmem:[#allocation8 + $0x180] sm:$0xff]
        %v607 = vld [vmem:[#allocation8 + $0x188] sm:$0xff]
        %v608 = vld [vmem:[#allocation8 + $0x190] sm:$0xff]
        %v609 = vld [vmem:[#allocation8 + $0x198] sm:$0xff]
        %v610 = vld [vmem:[#allocation8 + $0x1a0] sm:$0xff]
        %v611 = vld [vmem:[#allocation8 + $0x1a8] sm:$0xff]
        %v612 = vld [vmem:[#allocation8 + $0x1b0] sm:$0xff]
        %v613 = vld [vmem:[#allocation8 + $0x1b8] sm:$0xff]
        %v614 = vld [vmem:[#allocation8 + $0x1c0] sm:$0xff]
        %v615 = vld [vmem:[#allocation8 + $0x1c8] sm:$0xff]
        %v616 = vld [vmem:[#allocation8 + $0x1d0] sm:$0xff]
        %v617 = vld [vmem:[#allocation8 + $0x1d8] sm:$0xff]
        %v618 = vld [vmem:[#allocation8 + $0x1e0] sm:$0xff]
        %v619 = vld [vmem:[#allocation8 + $0x1e8] sm:$0xff]
        %v620 = vld [vmem:[#allocation8 + $0x1f0] sm:$0xff]
        %v621 = vld [vmem:[#allocation8 + $0x1f8] sm:$0xff]
        %v622 = vld [vmem:[#allocation8 + $0x200] sm:$0xff]
        %v623 = vld [vmem:[#allocation8 + $0x208] sm:$0xff]
        %v624 = vld [vmem:[#allocation8 + $0x210] sm:$0xff]
        %v625 = vld [vmem:[#allocation8 + $0x218] sm:$0xff]
        %v626 = vld [vmem:[#allocation8 + $0x220] sm:$0xff]
        %v627 = vld [vmem:[#allocation8 + $0x228] sm:$0xff]
        %v628 = vld [vmem:[#allocation8 + $0x230] sm:$0xff]
        %v629 = vld [vmem:[#allocation8 + $0x238] sm:$0xff]
        %v630 = vld [vmem:[#allocation8 + $0x240] sm:$0xff]
        %v631 = vld [vmem:[#allocation8 + $0x248] sm:$0xff]
        %v632 = vld [vmem:[#allocation8 + $0x250] sm:$0xff]
        %v633 = vld [vmem:[#allocation8 + $0x258] sm:$0xff]
        %v634 = vld [vmem:[#allocation8 + $0x260] sm:$0xff]
        %v635 = vld [vmem:[#allocation8 + $0x268] sm:$0xff]
        %v636 = vld [vmem:[#allocation8 + $0x270] sm:$0xff]
        %v637 = vld [vmem:[#allocation8 + $0x278] sm:$0xff]
        %v638 = vld [vmem:[#allocation8 + $0x280] sm:$0xff]
        %v639 = vld [vmem:[#allocation8 + $0x288] sm:$0xff]
        %v640 = vld [vmem:[#allocation8 + $0x290] sm:$0xff]
        %v641 = vld [vmem:[#allocation8 + $0x298] sm:$0xff]
        %v642 = vld [vmem:[#allocation8 + $0x2a0] sm:$0xff]
        %v643 = vld [vmem:[#allocation8 + $0x2a8] sm:$0xff]
        %v644 = vld [vmem:[#allocation8 + $0x2b0] sm:$0xff]
        %v645 = vld [vmem:[#allocation8 + $0x2b8] sm:$0xff]
        %v646 = vld [vmem:[#allocation8 + $0x2c0] sm:$0xff]
        %v647 = vld [vmem:[#allocation8 + $0x2c8] sm:$0xff]
        %v648 = vld [vmem:[#allocation8 + $0x2d0] sm:$0xff]
        %v649 = vld [vmem:[#allocation8 + $0x2d8] sm:$0xff]
        %v650 = vld [vmem:[#allocation8 + $0x2e0] sm:$0xff]
        %v651 = vld [vmem:[#allocation8 + $0x2e8] sm:$0xff]
        %v652 = vld [vmem:[#allocation8 + $0x2f0] sm:$0xff]
        %v653 = vld [vmem:[#allocation8 + $0x2f8] sm:$0xff]
        %v654 = vld [vmem:[#allocation8 + $0x300] sm:$0xff]
        %v655 = vld [vmem:[#allocation8 + $0x308] sm:$0xff]
        %v656 = vld [vmem:[#allocation8 + $0x310] sm:$0xff]
        %v657 = vld [vmem:[#allocation8 + $0x318] sm:$0xff]
        %v658 = vld [vmem:[#allocation8 + $0x320] sm:$0xff]
        %v659 = vld [vmem:[#allocation8 + $0x328] sm:$0xff]
        %v660 = vld [vmem:[#allocation8 + $0x330] sm:$0xff]
        %v661 = vld [vmem:[#allocation8 + $0x338] sm:$0xff]
        %v662 = vld [vmem:[#allocation8 + $0x340] sm:$0xff]
        %v663 = vld [vmem:[#allocation8 + $0x348] sm:$0xff]
        %v664 = vld [vmem:[#allocation8 + $0x350] sm:$0xff]
        %v665 = vld [vmem:[#allocation8 + $0x358] sm:$0xff]
        %v666 = vld [vmem:[#allocation8 + $0x360] sm:$0xff]
        %v667 = vld [vmem:[#allocation8 + $0x368] sm:$0xff]
        %v668 = vld [vmem:[#allocation8 + $0x370] sm:$0xff]
        %v669 = vld [vmem:[#allocation8 + $0x378] sm:$0xff]
        %v670 = vld [vmem:[#allocation8 + $0x380] sm:$0xff]
        %v671 = vld [vmem:[#allocation8 + $0x388] sm:$0xff]
        %v672 = vld [vmem:[#allocation8 + $0x390] sm:$0xff]
        %v673 = vld [vmem:[#allocation8 + $0x398] sm:$0xff]
        %v674 = vld [vmem:[#allocation8 + $0x3a0] sm:$0xff]
        %v675 = vld [vmem:[#allocation8 + $0x3a8] sm:$0xff]
        %v676 = vld [vmem:[#allocation8 + $0x3b0] sm:$0xff]
        %v677 = vld [vmem:[#allocation8 + $0x3b8] sm:$0xff]
        %v678 = vld [vmem:[#allocation8 + $0x3c0] sm:$0xff]
        %v679 = vld [vmem:[#allocation8 + $0x3c8] sm:$0xff]
        %v680 = vld [vmem:[#allocation8 + $0x3d0] sm:$0xff]
        %v681 = vld [vmem:[#allocation8 + $0x3d8] sm:$0xff]
        %v682 = vld [vmem:[#allocation8 + $0x3e0] sm:$0xff]
        %v683 = vld [vmem:[#allocation8 + $0x3e8] sm:$0xff]
        %v684 = vld [vmem:[#allocation8 + $0x3f0] sm:$0xff]
        %v685 = vld [vmem:[#allocation8 + $0x3f8] sm:$0xff]
        %v687 = vlaneseq
        %v688 = vshrl.u32 %v687, 7
        %v689 = vsub.s32 0, %v688
        %v690 = vrot.slane %v404, %v689
        %v691 = vlaneseq
        %v692 = vshrl.u32 %v691, 7
        %v693 = vsub.s32 1, %v692
        %v694 = vrot.slane %v404, %v693
        %v695 = vlaneseq
        %v696 = vshrl.u32 %v695, 7
        %v697 = vsub.s32 2, %v696
        %v698 = vrot.slane %v404, %v697
        %v699 = vlaneseq
        %v700 = vshrl.u32 %v699, 7
        %v701 = vsub.s32 3, %v700
        %v702 = vrot.slane %v404, %v701
        %v835 = vunpack.c.l.b16 %v558
        %v836 = vunpack.c.h.b16 %v558
        %v837 = vunpack.c.l.b16 %v559
        %v838 = vunpack.c.h.b16 %v559
        %v839 = vunpack.c.l.b16 %v560
        %v840 = vunpack.c.h.b16 %v560
        %v841 = vunpack.c.l.b16 %v561
        %v842 = vunpack.c.h.b16 %v561
        %v843 = vunpack.c.l.b16 %v562
        %v844 = vunpack.c.h.b16 %v562
        %v845 = vunpack.c.l.b16 %v563
        %v846 = vunpack.c.h.b16 %v563
        %v847 = vunpack.c.l.b16 %v564
        %v848 = vunpack.c.h.b16 %v564
        %v849 = vunpack.c.l.b16 %v565
        %v850 = vunpack.c.h.b16 %v565
        %v851 = vunpack.c.l.b16 %v566
        %v852 = vunpack.c.h.b16 %v566
        %v853 = vunpack.c.l.b16 %v567
        %v854 = vunpack.c.h.b16 %v567
        %v855 = vunpack.c.l.b16 %v568
        %v856 = vunpack.c.h.b16 %v568
        %v857 = vunpack.c.l.b16 %v569
        %v858 = vunpack.c.h.b16 %v569
        %v859 = vunpack.c.l.b16 %v570
        %v860 = vunpack.c.h.b16 %v570
        %v861 = vunpack.c.l.b16 %v571
        %v862 = vunpack.c.h.b16 %v571
        %v863 = vunpack.c.l.b16 %v572
        %v864 = vunpack.c.h.b16 %v572
        %v865 = vunpack.c.l.b16 %v573
        %v866 = vunpack.c.h.b16 %v573
        %v867 = vunpack.c.l.b16 %v574
        %v868 = vunpack.c.h.b16 %v574
        %v869 = vunpack.c.l.b16 %v575
        %v870 = vunpack.c.h.b16 %v575
        %v871 = vunpack.c.l.b16 %v576
        %v872 = vunpack.c.h.b16 %v576
        %v873 = vunpack.c.l.b16 %v577
        %v874 = vunpack.c.h.b16 %v577
        %v875 = vunpack.c.l.b16 %v578
        %v876 = vunpack.c.h.b16 %v578
        %v877 = vunpack.c.l.b16 %v579
        %v878 = vunpack.c.h.b16 %v579
        %v879 = vunpack.c.l.b16 %v580
        %v880 = vunpack.c.h.b16 %v580
        %v881 = vunpack.c.l.b16 %v581
        %v882 = vunpack.c.h.b16 %v581
        %v883 = vunpack.c.l.b16 %v582
        %v884 = vunpack.c.h.b16 %v582
        %v885 = vunpack.c.l.b16 %v583
        %v886 = vunpack.c.h.b16 %v583
        %v887 = vunpack.c.l.b16 %v584
        %v888 = vunpack.c.h.b16 %v584
        %v889 = vunpack.c.l.b16 %v585
        %v890 = vunpack.c.h.b16 %v585
        %v891 = vunpack.c.l.b16 %v586
        %v892 = vunpack.c.h.b16 %v586
        %v893 = vunpack.c.l.b16 %v587
        %v894 = vunpack.c.h.b16 %v587
        %v895 = vunpack.c.l.b16 %v588
        %v896 = vunpack.c.h.b16 %v588
        %v897 = vunpack.c.l.b16 %v589
        %v898 = vunpack.c.h.b16 %v589
        %v899 = vunpack.c.l.b16 %v590
        %v900 = vunpack.c.h.b16 %v590
        %v901 = vunpack.c.l.b16 %v591
        %v902 = vunpack.c.h.b16 %v591
        %v903 = vunpack.c.l.b16 %v592
        %v904 = vunpack.c.h.b16 %v592
        %v905 = vunpack.c.l.b16 %v593
        %v906 = vunpack.c.h.b16 %v593
        %v907 = vunpack.c.l.b16 %v594
        %v908 = vunpack.c.h.b16 %v594
        %v909 = vunpack.c.l.b16 %v595
        %v910 = vunpack.c.h.b16 %v595
        %v911 = vunpack.c.l.b16 %v596
        %v912 = vunpack.c.h.b16 %v596
        %v913 = vunpack.c.l.b16 %v597
        %v914 = vunpack.c.h.b16 %v597
        %v915 = vunpack.c.l.b16 %v598
        %v916 = vunpack.c.h.b16 %v598
        %v917 = vunpack.c.l.b16 %v599
        %v918 = vunpack.c.h.b16 %v599
        %v919 = vunpack.c.l.b16 %v600
        %v920 = vunpack.c.h.b16 %v600
        %v921 = vunpack.c.l.b16 %v601
        %v922 = vunpack.c.h.b16 %v601
        %v923 = vunpack.c.l.b16 %v602
        %v924 = vunpack.c.h.b16 %v602
        %v925 = vunpack.c.l.b16 %v603
        %v926 = vunpack.c.h.b16 %v603
        %v927 = vunpack.c.l.b16 %v604
        %v928 = vunpack.c.h.b16 %v604
        %v929 = vunpack.c.l.b16 %v605
        %v930 = vunpack.c.h.b16 %v605
        %v931 = vunpack.c.l.b16 %v606
        %v932 = vunpack.c.h.b16 %v606
        %v933 = vunpack.c.l.b16 %v607
        %v934 = vunpack.c.h.b16 %v607
        %v935 = vunpack.c.l.b16 %v608
        %v936 = vunpack.c.h.b16 %v608
        %v937 = vunpack.c.l.b16 %v609
        %v938 = vunpack.c.h.b16 %v609
        %v939 = vunpack.c.l.b16 %v610
        %v940 = vunpack.c.h.b16 %v610
        %v941 = vunpack.c.l.b16 %v611
        %v942 = vunpack.c.h.b16 %v611
        %v943 = vunpack.c.l.b16 %v612
        %v944 = vunpack.c.h.b16 %v612
        %v945 = vunpack.c.l.b16 %v613
        %v946 = vunpack.c.h.b16 %v613
        %v947 = vunpack.c.l.b16 %v614
        %v948 = vunpack.c.h.b16 %v614
        %v949 = vunpack.c.l.b16 %v615
        %v950 = vunpack.c.h.b16 %v615
        %v951 = vunpack.c.l.b16 %v616
        %v952 = vunpack.c.h.b16 %v616
        %v953 = vunpack.c.l.b16 %v617
        %v954 = vunpack.c.h.b16 %v617
        %v955 = vunpack.c.l.b16 %v618
        %v956 = vunpack.c.h.b16 %v618
        %v957 = vunpack.c.l.b16 %v619
        %v958 = vunpack.c.h.b16 %v619
        %v959 = vunpack.c.l.b16 %v620
        %v960 = vunpack.c.h.b16 %v620
        %v961 = vunpack.c.l.b16 %v621
        %v962 = vunpack.c.h.b16 %v621
        %v963 = vunpack.c.l.b16 %v622
        %v964 = vunpack.c.h.b16 %v622
        %v965 = vunpack.c.l.b16 %v623
        %v966 = vunpack.c.h.b16 %v623
        %v967 = vunpack.c.l.b16 %v624
        %v968 = vunpack.c.h.b16 %v624
        %v969 = vunpack.c.l.b16 %v625
        %v970 = vunpack.c.h.b16 %v625
        %v971 = vunpack.c.l.b16 %v626
        %v972 = vunpack.c.h.b16 %v626
        %v973 = vunpack.c.l.b16 %v627
        %v974 = vunpack.c.h.b16 %v627
        %v975 = vunpack.c.l.b16 %v628
        %v976 = vunpack.c.h.b16 %v628
        %v977 = vunpack.c.l.b16 %v629
        %v978 = vunpack.c.h.b16 %v629
        %v979 = vunpack.c.l.b16 %v630
        %v980 = vunpack.c.h.b16 %v630
        %v981 = vunpack.c.l.b16 %v631
        %v982 = vunpack.c.h.b16 %v631
        %v983 = vunpack.c.l.b16 %v632
        %v984 = vunpack.c.h.b16 %v632
        %v985 = vunpack.c.l.b16 %v633
        %v986 = vunpack.c.h.b16 %v633
        %v987 = vunpack.c.l.b16 %v634
        %v988 = vunpack.c.h.b16 %v634
        %v989 = vunpack.c.l.b16 %v635
        %v990 = vunpack.c.h.b16 %v635
        %v991 = vunpack.c.l.b16 %v636
        %v992 = vunpack.c.h.b16 %v636
        %v993 = vunpack.c.l.b16 %v637
        %v994 = vunpack.c.h.b16 %v637
        %v995 = vunpack.c.l.b16 %v638
        %v996 = vunpack.c.h.b16 %v638
        %v997 = vunpack.c.l.b16 %v639
        %v998 = vunpack.c.h.b16 %v639
        %v999 = vunpack.c.l.b16 %v640
        %v1000 = vunpack.c.h.b16 %v640
        %v1001 = vunpack.c.l.b16 %v641
        %v1002 = vunpack.c.h.b16 %v641
        %v1003 = vunpack.c.l.b16 %v642
        %v1004 = vunpack.c.h.b16 %v642
        %v1005 = vunpack.c.l.b16 %v643
        %v1006 = vunpack.c.h.b16 %v643
        %v1007 = vunpack.c.l.b16 %v644
        %v1008 = vunpack.c.h.b16 %v644
        %v1009 = vunpack.c.l.b16 %v645
        %v1010 = vunpack.c.h.b16 %v645
        %v1011 = vunpack.c.l.b16 %v646
        %v1012 = vunpack.c.h.b16 %v646
        %v1013 = vunpack.c.l.b16 %v647
        %v1014 = vunpack.c.h.b16 %v647
        %v1015 = vunpack.c.l.b16 %v648
        %v1016 = vunpack.c.h.b16 %v648
        %v1017 = vunpack.c.l.b16 %v649
        %v1018 = vunpack.c.h.b16 %v649
        %v1019 = vunpack.c.l.b16 %v650
        %v1020 = vunpack.c.h.b16 %v650
        %v1021 = vunpack.c.l.b16 %v651
        %v1022 = vunpack.c.h.b16 %v651
        %v1023 = vunpack.c.l.b16 %v652
        %v1024 = vunpack.c.h.b16 %v652
        %v1025 = vunpack.c.l.b16 %v653
        %v1026 = vunpack.c.h.b16 %v653
        %v1027 = vunpack.c.l.b16 %v654
        %v1028 = vunpack.c.h.b16 %v654
        %v1029 = vunpack.c.l.b16 %v655
        %v1030 = vunpack.c.h.b16 %v655
        %v1031 = vunpack.c.l.b16 %v656
        %v1032 = vunpack.c.h.b16 %v656
        %v1033 = vunpack.c.l.b16 %v657
        %v1034 = vunpack.c.h.b16 %v657
        %v1035 = vunpack.c.l.b16 %v658
        %v1036 = vunpack.c.h.b16 %v658
        %v1037 = vunpack.c.l.b16 %v659
        %v1038 = vunpack.c.h.b16 %v659
        %v1039 = vunpack.c.l.b16 %v660
        %v1040 = vunpack.c.h.b16 %v660
        %v1041 = vunpack.c.l.b16 %v661
        %v1042 = vunpack.c.h.b16 %v661
        %v1043 = vunpack.c.l.b16 %v662
        %v1044 = vunpack.c.h.b16 %v662
        %v1045 = vunpack.c.l.b16 %v663
        %v1046 = vunpack.c.h.b16 %v663
        %v1047 = vunpack.c.l.b16 %v664
        %v1048 = vunpack.c.h.b16 %v664
        %v1049 = vunpack.c.l.b16 %v665
        %v1050 = vunpack.c.h.b16 %v665
        %v1051 = vunpack.c.l.b16 %v666
        %v1052 = vunpack.c.h.b16 %v666
        %v1053 = vunpack.c.l.b16 %v667
        %v1054 = vunpack.c.h.b16 %v667
        %v1055 = vunpack.c.l.b16 %v668
        %v1056 = vunpack.c.h.b16 %v668
        %v1057 = vunpack.c.l.b16 %v669
        %v1058 = vunpack.c.h.b16 %v669
        %v1059 = vunpack.c.l.b16 %v670
        %v1060 = vunpack.c.h.b16 %v670
        %v1061 = vunpack.c.l.b16 %v671
        %v1062 = vunpack.c.h.b16 %v671
        %v1063 = vunpack.c.l.b16 %v672
        %v1064 = vunpack.c.h.b16 %v672
        %v1065 = vunpack.c.l.b16 %v673
        %v1066 = vunpack.c.h.b16 %v673
        %v1067 = vunpack.c.l.b16 %v674
        %v1068 = vunpack.c.h.b16 %v674
        %v1069 = vunpack.c.l.b16 %v675
        %v1070 = vunpack.c.h.b16 %v675
        %v1071 = vunpack.c.l.b16 %v676
        %v1072 = vunpack.c.h.b16 %v676
        %v1073 = vunpack.c.l.b16 %v677
        %v1074 = vunpack.c.h.b16 %v677
        %v1075 = vunpack.c.l.b16 %v678
        %v1076 = vunpack.c.h.b16 %v678
        %v1077 = vunpack.c.l.b16 %v679
        %v1078 = vunpack.c.h.b16 %v679
        %v1079 = vunpack.c.l.b16 %v680
        %v1080 = vunpack.c.h.b16 %v680
        %v1081 = vunpack.c.l.b16 %v681
        %v1082 = vunpack.c.h.b16 %v681
        %v1083 = vunpack.c.l.b16 %v682
        %v1084 = vunpack.c.h.b16 %v682
        %v1085 = vunpack.c.l.b16 %v683
        %v1086 = vunpack.c.h.b16 %v683
        %v1087 = vunpack.c.l.b16 %v684
        %v1088 = vunpack.c.h.b16 %v684
        %v1089 = vunpack.c.l.b16 %v685
        %v1090 = vunpack.c.h.b16 %v685
        %v1091 = vpack.c.b16 %v839, %v835
        %v1092 = vpack.c.b16 %v840, %v836
        %v1093 = vpack.c.b16 %v841, %v837
        %v1094 = vpack.c.b16 %v842, %v838
        %v1095 = vpack.c.b16 %v847, %v843
        %v1096 = vpack.c.b16 %v848, %v844
        %v1097 = vpack.c.b16 %v849, %v845
        %v1098 = vpack.c.b16 %v850, %v846
        %v1099 = vpack.c.b16 %v855, %v851
        %v1100 = vpack.c.b16 %v856, %v852
        %v1101 = vpack.c.b16 %v857, %v853
        %v1102 = vpack.c.b16 %v858, %v854
        %v1103 = vpack.c.b16 %v863, %v859
        %v1104 = vpack.c.b16 %v864, %v860
        %v1105 = vpack.c.b16 %v865, %v861
        %v1106 = vpack.c.b16 %v866, %v862
        %v1107 = vpack.c.b16 %v871, %v867
        %v1108 = vpack.c.b16 %v872, %v868
        %v1109 = vpack.c.b16 %v873, %v869
        %v1110 = vpack.c.b16 %v874, %v870
        %v1111 = vpack.c.b16 %v879, %v875
        %v1112 = vpack.c.b16 %v880, %v876
        %v1113 = vpack.c.b16 %v881, %v877
        %v1114 = vpack.c.b16 %v882, %v878
        %v1115 = vpack.c.b16 %v887, %v883
        %v1116 = vpack.c.b16 %v888, %v884
        %v1117 = vpack.c.b16 %v889, %v885
        %v1118 = vpack.c.b16 %v890, %v886
        %v1119 = vpack.c.b16 %v895, %v891
        %v1120 = vpack.c.b16 %v896, %v892
        %v1121 = vpack.c.b16 %v897, %v893
        %v1122 = vpack.c.b16 %v898, %v894
        %v1123 = vpack.c.b16 %v903, %v899
        %v1124 = vpack.c.b16 %v904, %v900
        %v1125 = vpack.c.b16 %v905, %v901
        %v1126 = vpack.c.b16 %v906, %v902
        %v1127 = vpack.c.b16 %v911, %v907
        %v1128 = vpack.c.b16 %v912, %v908
        %v1129 = vpack.c.b16 %v913, %v909
        %v1130 = vpack.c.b16 %v914, %v910
        %v1131 = vpack.c.b16 %v919, %v915
        %v1132 = vpack.c.b16 %v920, %v916
        %v1133 = vpack.c.b16 %v921, %v917
        %v1134 = vpack.c.b16 %v922, %v918
        %v1135 = vpack.c.b16 %v927, %v923
        %v1136 = vpack.c.b16 %v928, %v924
        %v1137 = vpack.c.b16 %v929, %v925
        %v1138 = vpack.c.b16 %v930, %v926
        %v1139 = vpack.c.b16 %v935, %v931
        %v1140 = vpack.c.b16 %v936, %v932
        %v1141 = vpack.c.b16 %v937, %v933
        %v1142 = vpack.c.b16 %v938, %v934
        %v1143 = vpack.c.b16 %v943, %v939
        %v1144 = vpack.c.b16 %v944, %v940
        %v1145 = vpack.c.b16 %v945, %v941
        %v1146 = vpack.c.b16 %v946, %v942
        %v1147 = vpack.c.b16 %v951, %v947
        %v1148 = vpack.c.b16 %v952, %v948
        %v1149 = vpack.c.b16 %v953, %v949
        %v1150 = vpack.c.b16 %v954, %v950
        %v1151 = vpack.c.b16 %v959, %v955
        %v1152 = vpack.c.b16 %v960, %v956
        %v1153 = vpack.c.b16 %v961, %v957
        %v1154 = vpack.c.b16 %v962, %v958
        %v1155 = vpack.c.b16 %v967, %v963
        %v1156 = vpack.c.b16 %v968, %v964
        %v1157 = vpack.c.b16 %v969, %v965
        %v1158 = vpack.c.b16 %v970, %v966
        %v1159 = vpack.c.b16 %v975, %v971
        %v1160 = vpack.c.b16 %v976, %v972
        %v1161 = vpack.c.b16 %v977, %v973
        %v1162 = vpack.c.b16 %v978, %v974
        %v1163 = vpack.c.b16 %v983, %v979
        %v1164 = vpack.c.b16 %v984, %v980
        %v1165 = vpack.c.b16 %v985, %v981
        %v1166 = vpack.c.b16 %v986, %v982
        %v1167 = vpack.c.b16 %v991, %v987
        %v1168 = vpack.c.b16 %v992, %v988
        %v1169 = vpack.c.b16 %v993, %v989
        %v1170 = vpack.c.b16 %v994, %v990
        %v1171 = vpack.c.b16 %v999, %v995
        %v1172 = vpack.c.b16 %v1000, %v996
        %v1173 = vpack.c.b16 %v1001, %v997
        %v1174 = vpack.c.b16 %v1002, %v998
        %v1175 = vpack.c.b16 %v1007, %v1003
        %v1176 = vpack.c.b16 %v1008, %v1004
        %v1177 = vpack.c.b16 %v1009, %v1005
        %v1178 = vpack.c.b16 %v1010, %v1006
        %v1179 = vpack.c.b16 %v1015, %v1011
        %v1180 = vpack.c.b16 %v1016, %v1012
        %v1181 = vpack.c.b16 %v1017, %v1013
        %v1182 = vpack.c.b16 %v1018, %v1014
        %v1183 = vpack.c.b16 %v1023, %v1019
        %v1184 = vpack.c.b16 %v1024, %v1020
        %v1185 = vpack.c.b16 %v1025, %v1021
        %v1186 = vpack.c.b16 %v1026, %v1022
        %v1187 = vpack.c.b16 %v1031, %v1027
        %v1188 = vpack.c.b16 %v1032, %v1028
        %v1189 = vpack.c.b16 %v1033, %v1029
        %v1190 = vpack.c.b16 %v1034, %v1030
        %v1191 = vpack.c.b16 %v1039, %v1035
        %v1192 = vpack.c.b16 %v1040, %v1036
        %v1193 = vpack.c.b16 %v1041, %v1037
        %v1194 = vpack.c.b16 %v1042, %v1038
        %v1195 = vpack.c.b16 %v1047, %v1043
        %v1196 = vpack.c.b16 %v1048, %v1044
        %v1197 = vpack.c.b16 %v1049, %v1045
        %v1198 = vpack.c.b16 %v1050, %v1046
        %v1199 = vpack.c.b16 %v1055, %v1051
        %v1200 = vpack.c.b16 %v1056, %v1052
        %v1201 = vpack.c.b16 %v1057, %v1053
        %v1202 = vpack.c.b16 %v1058, %v1054
        %v1203 = vpack.c.b16 %v1063, %v1059
        %v1204 = vpack.c.b16 %v1064, %v1060
        %v1205 = vpack.c.b16 %v1065, %v1061
        %v1206 = vpack.c.b16 %v1066, %v1062
        %v1207 = vpack.c.b16 %v1071, %v1067
        %v1208 = vpack.c.b16 %v1072, %v1068
        %v1209 = vpack.c.b16 %v1073, %v1069
        %v1210 = vpack.c.b16 %v1074, %v1070
        %v1211 = vpack.c.b16 %v1079, %v1075
        %v1212 = vpack.c.b16 %v1080, %v1076
        %v1213 = vpack.c.b16 %v1081, %v1077
        %v1214 = vpack.c.b16 %v1082, %v1078
        %v1215 = vpack.c.b16 %v1087, %v1083
        %v1216 = vpack.c.b16 %v1088, %v1084
        %v1217 = vpack.c.b16 %v1089, %v1085
        %v1218 = vpack.c.b16 %v1090, %v1086
        %1347 = vmatprep.subr.bf16.mxu0 %v1092
        %1348 = vmatpush1.bf16.msra.mxu0 %v1091
        %1349 = vmatprep.subr.bf16.mxu0 %v1096
        %1350 = vmatpush1.bf16.msra.mxu0 %v1095
        %1351 = vmatprep.subr.bf16.mxu0 %v1100
        %1352 = vmatpush1.bf16.msra.mxu0 %v1099
        %1353 = vmatprep.subr.bf16.mxu0 %v1104
        %1354 = vmatpush1.bf16.msra.mxu0 %v1103
        %1355 = vmatprep.subr.bf16.mxu0 %v1108
        %1356 = vmatpush1.bf16.msra.mxu0 %v1107
        %1357 = vmatprep.subr.bf16.mxu0 %v1112
        %1358 = vmatpush1.bf16.msra.mxu0 %v1111
        %1359 = vmatprep.subr.bf16.mxu0 %v1116
        %1360 = vmatpush1.bf16.msra.mxu0 %v1115
        %1361 = vmatprep.subr.bf16.mxu0 %v1120
        %1362 = vmatpush1.bf16.msra.mxu0 %v1119
        %1363 = vmatprep.subr.bf16.mxu0 %v1124
        %1364 = vmatpush1.bf16.msra.mxu0 %v1123
        %1365 = vmatprep.subr.bf16.mxu0 %v1128
        %1366 = vmatpush1.bf16.msra.mxu0 %v1127
        %1367 = vmatprep.subr.bf16.mxu0 %v1132
        %1368 = vmatpush1.bf16.msra.mxu0 %v1131
        %1369 = vmatprep.subr.bf16.mxu0 %v1136
        %1370 = vmatpush1.bf16.msra.mxu0 %v1135
        %1371 = vmatprep.subr.bf16.mxu0 %v1140
        %1372 = vmatpush1.bf16.msra.mxu0 %v1139
        %1373 = vmatprep.subr.bf16.mxu0 %v1144
        %1374 = vmatpush1.bf16.msra.mxu0 %v1143
        %1375 = vmatprep.subr.bf16.mxu0 %v1148
        %1376 = vmatpush1.bf16.msra.mxu0 %v1147
        %1377 = vmatprep.subr.bf16.mxu0 %v1152
        %1378 = vmatpush1.bf16.msra.mxu0 %v1151
        %1379 = vmatprep.mubr.bf16.mxu0 %v555
        %1380 = vmatmul.mubr.bf16.gmra.mrb[0].mxu0 %v554
        %v1381 = vpop.f32.mrb[0].mxu0
        %v1382 = vadd.f32 %v690, %v1381
        %v1383 = vpop.f32.mrb[0].mxu0
        %v1384 = vadd.f32 %v694, %v1383
        %v1385 = vpop.f32.mrb[0].mxu0
        %v1386 = vpop.f32.mrb[0].mxu0
        %1387 = vdwg.mxu0
        %1388 = vmatprep.subr.bf16.mxu0 %v1156
        %1389 = vmatpush1.bf16.msra.mxu0 %v1155
        %1390 = vmatprep.subr.bf16.mxu0 %v1160
        %1391 = vmatpush1.bf16.msra.mxu0 %v1159
        %1392 = vmatprep.subr.bf16.mxu0 %v1164
        %1393 = vmatpush1.bf16.msra.mxu0 %v1163
        %1394 = vmatprep.subr.bf16.mxu0 %v1168
        %1395 = vmatpush1.bf16.msra.mxu0 %v1167
        %1396 = vmatprep.subr.bf16.mxu0 %v1172
        %1397 = vmatpush1.bf16.msra.mxu0 %v1171
        %1398 = vmatprep.subr.bf16.mxu0 %v1176
        %1399 = vmatpush1.bf16.msra.mxu0 %v1175
        %1400 = vmatprep.subr.bf16.mxu0 %v1180
        %1401 = vmatpush1.bf16.msra.mxu0 %v1179
        %1402 = vmatprep.subr.bf16.mxu0 %v1184
        %1403 = vmatpush1.bf16.msra.mxu0 %v1183
        %1404 = vmatprep.subr.bf16.mxu0 %v1188
        %1405 = vmatpush1.bf16.msra.mxu0 %v1187
        %1406 = vmatprep.subr.bf16.mxu0 %v1192
        %1407 = vmatpush1.bf16.msra.mxu0 %v1191
        %1408 = vmatprep.subr.bf16.mxu0 %v1196
        %1409 = vmatpush1.bf16.msra.mxu0 %v1195
        %1410 = vmatprep.subr.bf16.mxu0 %v1200
        %1411 = vmatpush1.bf16.msra.mxu0 %v1199
        %1412 = vmatprep.subr.bf16.mxu0 %v1204
        %1413 = vmatpush1.bf16.msra.mxu0 %v1203
        %1414 = vmatprep.subr.bf16.mxu0 %v1208
        %1415 = vmatpush1.bf16.msra.mxu0 %v1207
        %1416 = vmatprep.subr.bf16.mxu0 %v1212
        %1417 = vmatpush1.bf16.msra.mxu0 %v1211
        %1418 = vmatprep.subr.bf16.mxu0 %v1216
        %1419 = vmatpush1.bf16.msra.mxu0 %v1215
        %1420 = vmatprep.mubr.bf16.mxu0 %v557
        %1421 = vmatmul.mubr.bf16.gmra.mrb[0].mxu0 %v556
        %v1422 = vpop.f32.mrb[0].mxu0
        %v1423 = vadd.f32 %v1382, %v1422
        %v1424 = vpop.f32.mrb[0].mxu0
        %v1425 = vadd.f32 %v1384, %v1424
        %v1426 = vpop.f32.mrb[0].mxu0
        %v1427 = vpop.f32.mrb[0].mxu0
        %1428 = vdwg.mxu0
        %1429 = vmatprep.subr.bf16.mxu0 %v1094
        %1430 = vmatpush1.bf16.msra.mxu0 %v1093
        %1431 = vmatprep.subr.bf16.mxu0 %v1098
        %1432 = vmatpush1.bf16.msra.mxu0 %v1097
        %1433 = vmatprep.subr.bf16.mxu0 %v1102
        %1434 = vmatpush1.bf16.msra.mxu0 %v1101
        %1435 = vmatprep.subr.bf16.mxu0 %v1106
        %1436 = vmatpush1.bf16.msra.mxu0 %v1105
        %1437 = vmatprep.subr.bf16.mxu0 %v1110
        %1438 = vmatpush1.bf16.msra.mxu0 %v1109
        %1439 = vmatprep.subr.bf16.mxu0 %v1114
        %1440 = vmatpush1.bf16.msra.mxu0 %v1113
        %1441 = vmatprep.subr.bf16.mxu0 %v1118
        %1442 = vmatpush1.bf16.msra.mxu0 %v1117
        %1443 = vmatprep.subr.bf16.mxu0 %v1122
        %1444 = vmatpush1.bf16.msra.mxu0 %v1121
        %1445 = vmatprep.subr.bf16.mxu0 %v1126
        %1446 = vmatpush1.bf16.msra.mxu0 %v1125
        %1447 = vmatprep.subr.bf16.mxu0 %v1130
        %1448 = vmatpush1.bf16.msra.mxu0 %v1129
        %1449 = vmatprep.subr.bf16.mxu0 %v1134
        %1450 = vmatpush1.bf16.msra.mxu0 %v1133
        %1451 = vmatprep.subr.bf16.mxu0 %v1138
        %1452 = vmatpush1.bf16.msra.mxu0 %v1137
        %1453 = vmatprep.subr.bf16.mxu0 %v1142
        %1454 = vmatpush1.bf16.msra.mxu0 %v1141
        %1455 = vmatprep.subr.bf16.mxu0 %v1146
        %1456 = vmatpush1.bf16.msra.mxu0 %v1145
        %1457 = vmatprep.subr.bf16.mxu0 %v1150
        %1458 = vmatpush1.bf16.msra.mxu0 %v1149
        %1459 = vmatprep.subr.bf16.mxu0 %v1154
        %1460 = vmatpush1.bf16.msra.mxu0 %v1153
        %1461 = vmatprep.mubr.bf16.mxu0 %v555
        %1462 = vmatmul.mubr.bf16.gmra.mrb[0].mxu0 %v554
        %v1463 = vpop.f32.mrb[0].mxu0
        %v1464 = vadd.f32 %v698, %v1463
        %v1465 = vpop.f32.mrb[0].mxu0
        %v1466 = vadd.f32 %v702, %v1465
        %v1467 = vpop.f32.mrb[0].mxu0
        %v1468 = vpop.f32.mrb[0].mxu0
        %1469 = vdwg.mxu0
        %1470 = vmatprep.subr.bf16.mxu0 %v1158
        %1471 = vmatpush1.bf16.msra.mxu0 %v1157
        %1472 = vmatprep.subr.bf16.mxu0 %v1162
        %1473 = vmatpush1.bf16.msra.mxu0 %v1161
        %1474 = vmatprep.subr.bf16.mxu0 %v1166
        %1475 = vmatpush1.bf16.msra.mxu0 %v1165
        %1476 = vmatprep.subr.bf16.mxu0 %v1170
        %1477 = vmatpush1.bf16.msra.mxu0 %v1169
        %1478 = vmatprep.subr.bf16.mxu0 %v1174
        %1479 = vmatpush1.bf16.msra.mxu0 %v1173
        %1480 = vmatprep.subr.bf16.mxu0 %v1178
        %1481 = vmatpush1.bf16.msra.mxu0 %v1177
        %1482 = vmatprep.subr.bf16.mxu0 %v1182
        %1483 = vmatpush1.bf16.msra.mxu0 %v1181
        %1484 = vmatprep.subr.bf16.mxu0 %v1186
        %1485 = vmatpush1.bf16.msra.mxu0 %v1185
        %1486 = vmatprep.subr.bf16.mxu0 %v1190
        %1487 = vmatpush1.bf16.msra.mxu0 %v1189
        %1488 = vmatprep.subr.bf16.mxu0 %v1194
        %1489 = vmatpush1.bf16.msra.mxu0 %v1193
        %1490 = vmatprep.subr.bf16.mxu0 %v1198
        %1491 = vmatpush1.bf16.msra.mxu0 %v1197
        %1492 = vmatprep.subr.bf16.mxu0 %v1202
        %1493 = vmatpush1.bf16.msra.mxu0 %v1201
        %1494 = vmatprep.subr.bf16.mxu0 %v1206
        %1495 = vmatpush1.bf16.msra.mxu0 %v1205
        %1496 = vmatprep.subr.bf16.mxu0 %v1210
        %1497 = vmatpush1.bf16.msra.mxu0 %v1209
        %1498 = vmatprep.subr.bf16.mxu0 %v1214
        %1499 = vmatpush1.bf16.msra.mxu0 %v1213
        %1500 = vmatprep.subr.bf16.mxu0 %v1218
        %1501 = vmatpush1.bf16.msra.mxu0 %v1217
        %1502 = vmatprep.mubr.bf16.mxu0 %v557
        %1503 = vmatmul.mubr.bf16.gmra.mrb[0].mxu0 %v556
        %v1504 = vpop.f32.mrb[0].mxu0
        %v1505 = vadd.f32 %v1464, %v1504
        %v1506 = vpop.f32.mrb[0].mxu0
        %v1507 = vadd.f32 %v1466, %v1506
        %v1508 = vpop.f32.mrb[0].mxu0
        %v1509 = vpop.f32.mrb[0].mxu0
        %1510 = vdwg.mxu0
        %v1511 = vmax.f32 %v1423, 0.0
        %v1512 = vmax.f32 %v1425, 0.0
        %v1513 = vmax.f32 %v1505, 0.0
        %v1514 = vmax.f32 %v1507, 0.0
        %v1515 = vpack.c.bf16 %v1511, %v1511
        %v1516 = vpack.c.bf16 %v1512, %v1512
        %v1517 = vpack.c.bf16 %v1513, %v1513
        %v1518 = vpack.c.bf16 %v1514, %v1514
        %v1519 = vld [vmem:[#allocation10] sm:$0xff]
        %v1520 = vld [vmem:[#allocation10 + $0x8] sm:$0xff]
        %v1521 = vld [vmem:[#allocation10 + $0x10] sm:$0xff]
        %v1522 = vld [vmem:[#allocation10 + $0x18] sm:$0xff]
        %v1523 = vld [vmem:[#allocation10 + $0x20] sm:$0xff]
        %v1524 = vld [vmem:[#allocation10 + $0x28] sm:$0xff]
        %v1525 = vld [vmem:[#allocation10 + $0x30] sm:$0xff]
        %v1526 = vld [vmem:[#allocation10 + $0x38] sm:$0xff]
        %v1527 = vld [vmem:[#allocation10 + $0x40] sm:$0xff]
        %v1528 = vld [vmem:[#allocation10 + $0x48] sm:$0xff]
        %v1529 = vld [vmem:[#allocation10 + $0x50] sm:$0xff]
        %v1530 = vld [vmem:[#allocation10 + $0x58] sm:$0xff]
        %v1531 = vld [vmem:[#allocation10 + $0x60] sm:$0xff]
        %v1532 = vld [vmem:[#allocation10 + $0x68] sm:$0xff]
        %v1533 = vld [vmem:[#allocation10 + $0x70] sm:$0xff]
        %v1534 = vld [vmem:[#allocation10 + $0x78] sm:$0xff]
        %v1535 = vld [vmem:[#allocation10 + $0x80] sm:$0xff]
        %v1536 = vld [vmem:[#allocation10 + $0x88] sm:$0xff]
        %v1537 = vld [vmem:[#allocation10 + $0x90] sm:$0xff]
        %v1538 = vld [vmem:[#allocation10 + $0x98] sm:$0xff]
        %v1539 = vld [vmem:[#allocation10 + $0xa0] sm:$0xff]
        %v1540 = vld [vmem:[#allocation10 + $0xa8] sm:$0xff]
        %v1541 = vld [vmem:[#allocation10 + $0xb0] sm:$0xff]
        %v1542 = vld [vmem:[#allocation10 + $0xb8] sm:$0xff]
        %v1543 = vld [vmem:[#allocation10 + $0xc0] sm:$0xff]
        %v1544 = vld [vmem:[#allocation10 + $0xc8] sm:$0xff]
        %v1545 = vld [vmem:[#allocation10 + $0xd0] sm:$0xff]
        %v1546 = vld [vmem:[#allocation10 + $0xd8] sm:$0xff]
        %v1547 = vld [vmem:[#allocation10 + $0xe0] sm:$0xff]
        %v1548 = vld [vmem:[#allocation10 + $0xe8] sm:$0xff]
        %v1549 = vld [vmem:[#allocation10 + $0xf0] sm:$0xff]
        %v1550 = vld [vmem:[#allocation10 + $0xf8] sm:$0xff]
        %v1551 = vld [vmem:[#allocation10 + $0x100] sm:$0xff]
        %v1552 = vld [vmem:[#allocation10 + $0x108] sm:$0xff]
        %v1553 = vld [vmem:[#allocation10 + $0x110] sm:$0xff]
        %v1554 = vld [vmem:[#allocation10 + $0x118] sm:$0xff]
        %v1555 = vld [vmem:[#allocation10 + $0x120] sm:$0xff]
        %v1556 = vld [vmem:[#allocation10 + $0x128] sm:$0xff]
        %v1557 = vld [vmem:[#allocation10 + $0x130] sm:$0xff]
        %v1558 = vld [vmem:[#allocation10 + $0x138] sm:$0xff]
        %v1559 = vld [vmem:[#allocation10 + $0x140] sm:$0xff]
        %v1560 = vld [vmem:[#allocation10 + $0x148] sm:$0xff]
        %v1561 = vld [vmem:[#allocation10 + $0x150] sm:$0xff]
        %v1562 = vld [vmem:[#allocation10 + $0x158] sm:$0xff]
        %v1563 = vld [vmem:[#allocation10 + $0x160] sm:$0xff]
        %v1564 = vld [vmem:[#allocation10 + $0x168] sm:$0xff]
        %v1565 = vld [vmem:[#allocation10 + $0x170] sm:$0xff]
        %v1566 = vld [vmem:[#allocation10 + $0x178] sm:$0xff]
        %v1567 = vld [vmem:[#allocation10 + $0x180] sm:$0xff]
        %v1568 = vld [vmem:[#allocation10 + $0x188] sm:$0xff]
        %v1569 = vld [vmem:[#allocation10 + $0x190] sm:$0xff]
        %v1570 = vld [vmem:[#allocation10 + $0x198] sm:$0xff]
        %v1571 = vld [vmem:[#allocation10 + $0x1a0] sm:$0xff]
        %v1572 = vld [vmem:[#allocation10 + $0x1a8] sm:$0xff]
        %v1573 = vld [vmem:[#allocation10 + $0x1b0] sm:$0xff]
        %v1574 = vld [vmem:[#allocation10 + $0x1b8] sm:$0xff]
        %v1575 = vld [vmem:[#allocation10 + $0x1c0] sm:$0xff]
        %v1576 = vld [vmem:[#allocation10 + $0x1c8] sm:$0xff]
        %v1577 = vld [vmem:[#allocation10 + $0x1d0] sm:$0xff]
        %v1578 = vld [vmem:[#allocation10 + $0x1d8] sm:$0xff]
        %v1579 = vld [vmem:[#allocation10 + $0x1e0] sm:$0xff]
        %v1580 = vld [vmem:[#allocation10 + $0x1e8] sm:$0xff]
        %v1581 = vld [vmem:[#allocation10 + $0x1f0] sm:$0xff]
        %v1582 = vld [vmem:[#allocation10 + $0x1f8] sm:$0xff]
        %v1583 = vld [vmem:[#allocation10 + $0x200] sm:$0xff]
        %v1584 = vld [vmem:[#allocation10 + $0x208] sm:$0xff]
        %v1585 = vld [vmem:[#allocation10 + $0x210] sm:$0xff]
        %v1586 = vld [vmem:[#allocation10 + $0x218] sm:$0xff]
        %v1587 = vld [vmem:[#allocation10 + $0x220] sm:$0xff]
        %v1588 = vld [vmem:[#allocation10 + $0x228] sm:$0xff]
        %v1589 = vld [vmem:[#allocation10 + $0x230] sm:$0xff]
        %v1590 = vld [vmem:[#allocation10 + $0x238] sm:$0xff]
        %v1591 = vld [vmem:[#allocation10 + $0x240] sm:$0xff]
        %v1592 = vld [vmem:[#allocation10 + $0x248] sm:$0xff]
        %v1593 = vld [vmem:[#allocation10 + $0x250] sm:$0xff]
        %v1594 = vld [vmem:[#allocation10 + $0x258] sm:$0xff]
        %v1595 = vld [vmem:[#allocation10 + $0x260] sm:$0xff]
        %v1596 = vld [vmem:[#allocation10 + $0x268] sm:$0xff]
        %v1597 = vld [vmem:[#allocation10 + $0x270] sm:$0xff]
        %v1598 = vld [vmem:[#allocation10 + $0x278] sm:$0xff]
        %v1599 = vld [vmem:[#allocation10 + $0x280] sm:$0xff]
        %v1600 = vld [vmem:[#allocation10 + $0x288] sm:$0xff]
        %v1601 = vld [vmem:[#allocation10 + $0x290] sm:$0xff]
        %v1602 = vld [vmem:[#allocation10 + $0x298] sm:$0xff]
        %v1603 = vld [vmem:[#allocation10 + $0x2a0] sm:$0xff]
        %v1604 = vld [vmem:[#allocation10 + $0x2a8] sm:$0xff]
        %v1605 = vld [vmem:[#allocation10 + $0x2b0] sm:$0xff]
        %v1606 = vld [vmem:[#allocation10 + $0x2b8] sm:$0xff]
        %v1607 = vld [vmem:[#allocation10 + $0x2c0] sm:$0xff]
        %v1608 = vld [vmem:[#allocation10 + $0x2c8] sm:$0xff]
        %v1609 = vld [vmem:[#allocation10 + $0x2d0] sm:$0xff]
        %v1610 = vld [vmem:[#allocation10 + $0x2d8] sm:$0xff]
        %v1611 = vld [vmem:[#allocation10 + $0x2e0] sm:$0xff]
        %v1612 = vld [vmem:[#allocation10 + $0x2e8] sm:$0xff]
        %v1613 = vld [vmem:[#allocation10 + $0x2f0] sm:$0xff]
        %v1614 = vld [vmem:[#allocation10 + $0x2f8] sm:$0xff]
        %v1615 = vld [vmem:[#allocation10 + $0x300] sm:$0xff]
        %v1616 = vld [vmem:[#allocation10 + $0x308] sm:$0xff]
        %v1617 = vld [vmem:[#allocation10 + $0x310] sm:$0xff]
        %v1618 = vld [vmem:[#allocation10 + $0x318] sm:$0xff]
        %v1619 = vld [vmem:[#allocation10 + $0x320] sm:$0xff]
        %v1620 = vld [vmem:[#allocation10 + $0x328] sm:$0xff]
        %v1621 = vld [vmem:[#allocation10 + $0x330] sm:$0xff]
        %v1622 = vld [vmem:[#allocation10 + $0x338] sm:$0xff]
        %v1623 = vld [vmem:[#allocation10 + $0x340] sm:$0xff]
        %v1624 = vld [vmem:[#allocation10 + $0x348] sm:$0xff]
        %v1625 = vld [vmem:[#allocation10 + $0x350] sm:$0xff]
        %v1626 = vld [vmem:[#allocation10 + $0x358] sm:$0xff]
        %v1627 = vld [vmem:[#allocation10 + $0x360] sm:$0xff]
        %v1628 = vld [vmem:[#allocation10 + $0x368] sm:$0xff]
        %v1629 = vld [vmem:[#allocation10 + $0x370] sm:$0xff]
        %v1630 = vld [vmem:[#allocation10 + $0x378] sm:$0xff]
        %v1631 = vld [vmem:[#allocation10 + $0x380] sm:$0xff]
        %v1632 = vld [vmem:[#allocation10 + $0x388] sm:$0xff]
        %v1633 = vld [vmem:[#allocation10 + $0x390] sm:$0xff]
        %v1634 = vld [vmem:[#allocation10 + $0x398] sm:$0xff]
        %v1635 = vld [vmem:[#allocation10 + $0x3a0] sm:$0xff]
        %v1636 = vld [vmem:[#allocation10 + $0x3a8] sm:$0xff]
        %v1637 = vld [vmem:[#allocation10 + $0x3b0] sm:$0xff]
        %v1638 = vld [vmem:[#allocation10 + $0x3b8] sm:$0xff]
        %v1639 = vld [vmem:[#allocation10 + $0x3c0] sm:$0xff]
        %v1640 = vld [vmem:[#allocation10 + $0x3c8] sm:$0xff]
        %v1641 = vld [vmem:[#allocation10 + $0x3d0] sm:$0xff]
        %v1642 = vld [vmem:[#allocation10 + $0x3d8] sm:$0xff]
        %v1643 = vld [vmem:[#allocation10 + $0x3e0] sm:$0xff]
        %v1644 = vld [vmem:[#allocation10 + $0x3e8] sm:$0xff]
        %v1645 = vld [vmem:[#allocation10 + $0x3f0] sm:$0xff]
        %v1646 = vld [vmem:[#allocation10 + $0x3f8] sm:$0xff]
        %v1648 = vlaneseq
        %v1649 = vshrl.u32 %v1648, 7
        %v1650 = vsub.s32 0, %v1649
        %v1651 = vrot.slane %v406, %v1650
        %v1652 = vlaneseq
        %v1653 = vshrl.u32 %v1652, 7
        %v1654 = vsub.s32 1, %v1653
        %v1655 = vrot.slane %v406, %v1654
        %v1656 = vlaneseq
        %v1657 = vshrl.u32 %v1656, 7
        %v1658 = vsub.s32 2, %v1657
        %v1659 = vrot.slane %v406, %v1658
        %v1660 = vlaneseq
        %v1661 = vshrl.u32 %v1660, 7
        %v1662 = vsub.s32 3, %v1661
        %v1663 = vrot.slane %v406, %v1662
        %v1796 = vunpack.c.l.b16 %v1519
        %v1797 = vunpack.c.h.b16 %v1519
        %v1798 = vunpack.c.l.b16 %v1520
        %v1799 = vunpack.c.h.b16 %v1520
        %v1800 = vunpack.c.l.b16 %v1521
        %v1801 = vunpack.c.h.b16 %v1521
        %v1802 = vunpack.c.l.b16 %v1522
        %v1803 = vunpack.c.h.b16 %v1522
        %v1804 = vunpack.c.l.b16 %v1523
        %v1805 = vunpack.c.h.b16 %v1523
        %v1806 = vunpack.c.l.b16 %v1524
        %v1807 = vunpack.c.h.b16 %v1524
        %v1808 = vunpack.c.l.b16 %v1525
        %v1809 = vunpack.c.h.b16 %v1525
        %v1810 = vunpack.c.l.b16 %v1526
        %v1811 = vunpack.c.h.b16 %v1526
        %v1812 = vunpack.c.l.b16 %v1527
        %v1813 = vunpack.c.h.b16 %v1527
        %v1814 = vunpack.c.l.b16 %v1528
        %v1815 = vunpack.c.h.b16 %v1528
        %v1816 = vunpack.c.l.b16 %v1529
        %v1817 = vunpack.c.h.b16 %v1529
        %v1818 = vunpack.c.l.b16 %v1530
        %v1819 = vunpack.c.h.b16 %v1530
        %v1820 = vunpack.c.l.b16 %v1531
        %v1821 = vunpack.c.h.b16 %v1531
        %v1822 = vunpack.c.l.b16 %v1532
        %v1823 = vunpack.c.h.b16 %v1532
        %v1824 = vunpack.c.l.b16 %v1533
        %v1825 = vunpack.c.h.b16 %v1533
        %v1826 = vunpack.c.l.b16 %v1534
        %v1827 = vunpack.c.h.b16 %v1534
        %v1828 = vunpack.c.l.b16 %v1535
        %v1829 = vunpack.c.h.b16 %v1535
        %v1830 = vunpack.c.l.b16 %v1536
        %v1831 = vunpack.c.h.b16 %v1536
        %v1832 = vunpack.c.l.b16 %v1537
        %v1833 = vunpack.c.h.b16 %v1537
        %v1834 = vunpack.c.l.b16 %v1538
        %v1835 = vunpack.c.h.b16 %v1538
        %v1836 = vunpack.c.l.b16 %v1539
        %v1837 = vunpack.c.h.b16 %v1539
        %v1838 = vunpack.c.l.b16 %v1540
        %v1839 = vunpack.c.h.b16 %v1540
        %v1840 = vunpack.c.l.b16 %v1541
        %v1841 = vunpack.c.h.b16 %v1541
        %v1842 = vunpack.c.l.b16 %v1542
        %v1843 = vunpack.c.h.b16 %v1542
        %v1844 = vunpack.c.l.b16 %v1543
        %v1845 = vunpack.c.h.b16 %v1543
        %v1846 = vunpack.c.l.b16 %v1544
        %v1847 = vunpack.c.h.b16 %v1544
        %v1848 = vunpack.c.l.b16 %v1545
        %v1849 = vunpack.c.h.b16 %v1545
        %v1850 = vunpack.c.l.b16 %v1546
        %v1851 = vunpack.c.h.b16 %v1546
        %v1852 = vunpack.c.l.b16 %v1547
        %v1853 = vunpack.c.h.b16 %v1547
        %v1854 = vunpack.c.l.b16 %v1548
        %v1855 = vunpack.c.h.b16 %v1548
        %v1856 = vunpack.c.l.b16 %v1549
        %v1857 = vunpack.c.h.b16 %v1549
        %v1858 = vunpack.c.l.b16 %v1550
        %v1859 = vunpack.c.h.b16 %v1550
        %v1860 = vunpack.c.l.b16 %v1551
        %v1861 = vunpack.c.h.b16 %v1551
        %v1862 = vunpack.c.l.b16 %v1552
        %v1863 = vunpack.c.h.b16 %v1552
        %v1864 = vunpack.c.l.b16 %v1553
        %v1865 = vunpack.c.h.b16 %v1553
        %v1866 = vunpack.c.l.b16 %v1554
        %v1867 = vunpack.c.h.b16 %v1554
        %v1868 = vunpack.c.l.b16 %v1555
        %v1869 = vunpack.c.h.b16 %v1555
        %v1870 = vunpack.c.l.b16 %v1556
        %v1871 = vunpack.c.h.b16 %v1556
        %v1872 = vunpack.c.l.b16 %v1557
        %v1873 = vunpack.c.h.b16 %v1557
        %v1874 = vunpack.c.l.b16 %v1558
        %v1875 = vunpack.c.h.b16 %v1558
        %v1876 = vunpack.c.l.b16 %v1559
        %v1877 = vunpack.c.h.b16 %v1559
        %v1878 = vunpack.c.l.b16 %v1560
        %v1879 = vunpack.c.h.b16 %v1560
        %v1880 = vunpack.c.l.b16 %v1561
        %v1881 = vunpack.c.h.b16 %v1561
        %v1882 = vunpack.c.l.b16 %v1562
        %v1883 = vunpack.c.h.b16 %v1562
        %v1884 = vunpack.c.l.b16 %v1563
        %v1885 = vunpack.c.h.b16 %v1563
        %v1886 = vunpack.c.l.b16 %v1564
        %v1887 = vunpack.c.h.b16 %v1564
        %v1888 = vunpack.c.l.b16 %v1565
        %v1889 = vunpack.c.h.b16 %v1565
        %v1890 = vunpack.c.l.b16 %v1566
        %v1891 = vunpack.c.h.b16 %v1566
        %v1892 = vunpack.c.l.b16 %v1567
        %v1893 = vunpack.c.h.b16 %v1567
        %v1894 = vunpack.c.l.b16 %v1568
        %v1895 = vunpack.c.h.b16 %v1568
        %v1896 = vunpack.c.l.b16 %v1569
        %v1897 = vunpack.c.h.b16 %v1569
        %v1898 = vunpack.c.l.b16 %v1570
        %v1899 = vunpack.c.h.b16 %v1570
        %v1900 = vunpack.c.l.b16 %v1571
        %v1901 = vunpack.c.h.b16 %v1571
        %v1902 = vunpack.c.l.b16 %v1572
        %v1903 = vunpack.c.h.b16 %v1572
        %v1904 = vunpack.c.l.b16 %v1573
        %v1905 = vunpack.c.h.b16 %v1573
        %v1906 = vunpack.c.l.b16 %v1574
        %v1907 = vunpack.c.h.b16 %v1574
        %v1908 = vunpack.c.l.b16 %v1575
        %v1909 = vunpack.c.h.b16 %v1575
        %v1910 = vunpack.c.l.b16 %v1576
        %v1911 = vunpack.c.h.b16 %v1576
        %v1912 = vunpack.c.l.b16 %v1577
        %v1913 = vunpack.c.h.b16 %v1577
        %v1914 = vunpack.c.l.b16 %v1578
        %v1915 = vunpack.c.h.b16 %v1578
        %v1916 = vunpack.c.l.b16 %v1579
        %v1917 = vunpack.c.h.b16 %v1579
        %v1918 = vunpack.c.l.b16 %v1580
        %v1919 = vunpack.c.h.b16 %v1580
        %v1920 = vunpack.c.l.b16 %v1581
        %v1921 = vunpack.c.h.b16 %v1581
        %v1922 = vunpack.c.l.b16 %v1582
        %v1923 = vunpack.c.h.b16 %v1582
        %v1924 = vunpack.c.l.b16 %v1583
        %v1925 = vunpack.c.h.b16 %v1583
        %v1926 = vunpack.c.l.b16 %v1584
        %v1927 = vunpack.c.h.b16 %v1584
        %v1928 = vunpack.c.l.b16 %v1585
        %v1929 = vunpack.c.h.b16 %v1585
        %v1930 = vunpack.c.l.b16 %v1586
        %v1931 = vunpack.c.h.b16 %v1586
        %v1932 = vunpack.c.l.b16 %v1587
        %v1933 = vunpack.c.h.b16 %v1587
        %v1934 = vunpack.c.l.b16 %v1588
        %v1935 = vunpack.c.h.b16 %v1588
        %v1936 = vunpack.c.l.b16 %v1589
        %v1937 = vunpack.c.h.b16 %v1589
        %v1938 = vunpack.c.l.b16 %v1590
        %v1939 = vunpack.c.h.b16 %v1590
        %v1940 = vunpack.c.l.b16 %v1591
        %v1941 = vunpack.c.h.b16 %v1591
        %v1942 = vunpack.c.l.b16 %v1592
        %v1943 = vunpack.c.h.b16 %v1592
        %v1944 = vunpack.c.l.b16 %v1593
        %v1945 = vunpack.c.h.b16 %v1593
        %v1946 = vunpack.c.l.b16 %v1594
        %v1947 = vunpack.c.h.b16 %v1594
        %v1948 = vunpack.c.l.b16 %v1595
        %v1949 = vunpack.c.h.b16 %v1595
        %v1950 = vunpack.c.l.b16 %v1596
        %v1951 = vunpack.c.h.b16 %v1596
        %v1952 = vunpack.c.l.b16 %v1597
        %v1953 = vunpack.c.h.b16 %v1597
        %v1954 = vunpack.c.l.b16 %v1598
        %v1955 = vunpack.c.h.b16 %v1598
        %v1956 = vunpack.c.l.b16 %v1599
        %v1957 = vunpack.c.h.b16 %v1599
        %v1958 = vunpack.c.l.b16 %v1600
        %v1959 = vunpack.c.h.b16 %v1600
        %v1960 = vunpack.c.l.b16 %v1601
        %v1961 = vunpack.c.h.b16 %v1601
        %v1962 = vunpack.c.l.b16 %v1602
        %v1963 = vunpack.c.h.b16 %v1602
        %v1964 = vunpack.c.l.b16 %v1603
        %v1965 = vunpack.c.h.b16 %v1603
        %v1966 = vunpack.c.l.b16 %v1604
        %v1967 = vunpack.c.h.b16 %v1604
        %v1968 = vunpack.c.l.b16 %v1605
        %v1969 = vunpack.c.h.b16 %v1605
        %v1970 = vunpack.c.l.b16 %v1606
        %v1971 = vunpack.c.h.b16 %v1606
        %v1972 = vunpack.c.l.b16 %v1607
        %v1973 = vunpack.c.h.b16 %v1607
        %v1974 = vunpack.c.l.b16 %v1608
        %v1975 = vunpack.c.h.b16 %v1608
        %v1976 = vunpack.c.l.b16 %v1609
        %v1977 = vunpack.c.h.b16 %v1609
        %v1978 = vunpack.c.l.b16 %v1610
        %v1979 = vunpack.c.h.b16 %v1610
        %v1980 = vunpack.c.l.b16 %v1611
        %v1981 = vunpack.c.h.b16 %v1611
        %v1982 = vunpack.c.l.b16 %v1612
        %v1983 = vunpack.c.h.b16 %v1612
        %v1984 = vunpack.c.l.b16 %v1613
        %v1985 = vunpack.c.h.b16 %v1613
        %v1986 = vunpack.c.l.b16 %v1614
        %v1987 = vunpack.c.h.b16 %v1614
        %v1988 = vunpack.c.l.b16 %v1615
        %v1989 = vunpack.c.h.b16 %v1615
        %v1990 = vunpack.c.l.b16 %v1616
        %v1991 = vunpack.c.h.b16 %v1616
        %v1992 = vunpack.c.l.b16 %v1617
        %v1993 = vunpack.c.h.b16 %v1617
        %v1994 = vunpack.c.l.b16 %v1618
        %v1995 = vunpack.c.h.b16 %v1618
        %v1996 = vunpack.c.l.b16 %v1619
        %v1997 = vunpack.c.h.b16 %v1619
        %v1998 = vunpack.c.l.b16 %v1620
        %v1999 = vunpack.c.h.b16 %v1620
        %v2000 = vunpack.c.l.b16 %v1621
        %v2001 = vunpack.c.h.b16 %v1621
        %v2002 = vunpack.c.l.b16 %v1622
        %v2003 = vunpack.c.h.b16 %v1622
        %v2004 = vunpack.c.l.b16 %v1623
        %v2005 = vunpack.c.h.b16 %v1623
        %v2006 = vunpack.c.l.b16 %v1624
        %v2007 = vunpack.c.h.b16 %v1624
        %v2008 = vunpack.c.l.b16 %v1625
        %v2009 = vunpack.c.h.b16 %v1625
        %v2010 = vunpack.c.l.b16 %v1626
        %v2011 = vunpack.c.h.b16 %v1626
        %v2012 = vunpack.c.l.b16 %v1627
        %v2013 = vunpack.c.h.b16 %v1627
        %v2014 = vunpack.c.l.b16 %v1628
        %v2015 = vunpack.c.h.b16 %v1628
        %v2016 = vunpack.c.l.b16 %v1629
        %v2017 = vunpack.c.h.b16 %v1629
        %v2018 = vunpack.c.l.b16 %v1630
        %v2019 = vunpack.c.h.b16 %v1630
        %v2020 = vunpack.c.l.b16 %v1631
        %v2021 = vunpack.c.h.b16 %v1631
        %v2022 = vunpack.c.l.b16 %v1632
        %v2023 = vunpack.c.h.b16 %v1632
        %v2024 = vunpack.c.l.b16 %v1633
        %v2025 = vunpack.c.h.b16 %v1633
        %v2026 = vunpack.c.l.b16 %v1634
        %v2027 = vunpack.c.h.b16 %v1634
        %v2028 = vunpack.c.l.b16 %v1635
        %v2029 = vunpack.c.h.b16 %v1635
        %v2030 = vunpack.c.l.b16 %v1636
        %v2031 = vunpack.c.h.b16 %v1636
        %v2032 = vunpack.c.l.b16 %v1637
        %v2033 = vunpack.c.h.b16 %v1637
        %v2034 = vunpack.c.l.b16 %v1638
        %v2035 = vunpack.c.h.b16 %v1638
        %v2036 = vunpack.c.l.b16 %v1639
        %v2037 = vunpack.c.h.b16 %v1639
        %v2038 = vunpack.c.l.b16 %v1640
        %v2039 = vunpack.c.h.b16 %v1640
        %v2040 = vunpack.c.l.b16 %v1641
        %v2041 = vunpack.c.h.b16 %v1641
        %v2042 = vunpack.c.l.b16 %v1642
        %v2043 = vunpack.c.h.b16 %v1642
        %v2044 = vunpack.c.l.b16 %v1643
        %v2045 = vunpack.c.h.b16 %v1643
        %v2046 = vunpack.c.l.b16 %v1644
        %v2047 = vunpack.c.h.b16 %v1644
        %v2048 = vunpack.c.l.b16 %v1645
        %v2049 = vunpack.c.h.b16 %v1645
        %v2050 = vunpack.c.l.b16 %v1646
        %v2051 = vunpack.c.h.b16 %v1646
        %v2052 = vpack.c.b16 %v1800, %v1796
        %v2053 = vpack.c.b16 %v1801, %v1797
        %v2054 = vpack.c.b16 %v1802, %v1798
        %v2055 = vpack.c.b16 %v1803, %v1799
        %v2056 = vpack.c.b16 %v1808, %v1804
        %v2057 = vpack.c.b16 %v1809, %v1805
        %v2058 = vpack.c.b16 %v1810, %v1806
        %v2059 = vpack.c.b16 %v1811, %v1807
        %v2060 = vpack.c.b16 %v1816, %v1812
        %v2061 = vpack.c.b16 %v1817, %v1813
        %v2062 = vpack.c.b16 %v1818, %v1814
        %v2063 = vpack.c.b16 %v1819, %v1815
        %v2064 = vpack.c.b16 %v1824, %v1820
        %v2065 = vpack.c.b16 %v1825, %v1821
        %v2066 = vpack.c.b16 %v1826, %v1822
        %v2067 = vpack.c.b16 %v1827, %v1823
        %v2068 = vpack.c.b16 %v1832, %v1828
        %v2069 = vpack.c.b16 %v1833, %v1829
        %v2070 = vpack.c.b16 %v1834, %v1830
        %v2071 = vpack.c.b16 %v1835, %v1831
        %v2072 = vpack.c.b16 %v1840, %v1836
        %v2073 = vpack.c.b16 %v1841, %v1837
        %v2074 = vpack.c.b16 %v1842, %v1838
        %v2075 = vpack.c.b16 %v1843, %v1839
        %v2076 = vpack.c.b16 %v1848, %v1844
        %v2077 = vpack.c.b16 %v1849, %v1845
        %v2078 = vpack.c.b16 %v1850, %v1846
        %v2079 = vpack.c.b16 %v1851, %v1847
        %v2080 = vpack.c.b16 %v1856, %v1852
        %v2081 = vpack.c.b16 %v1857, %v1853
        %v2082 = vpack.c.b16 %v1858, %v1854
        %v2083 = vpack.c.b16 %v1859, %v1855
        %v2084 = vpack.c.b16 %v1864, %v1860
        %v2085 = vpack.c.b16 %v1865, %v1861
        %v2086 = vpack.c.b16 %v1866, %v1862
        %v2087 = vpack.c.b16 %v1867, %v1863
        %v2088 = vpack.c.b16 %v1872, %v1868
        %v2089 = vpack.c.b16 %v1873, %v1869
        %v2090 = vpack.c.b16 %v1874, %v1870
        %v2091 = vpack.c.b16 %v1875, %v1871
        %v2092 = vpack.c.b16 %v1880, %v1876
        %v2093 = vpack.c.b16 %v1881, %v1877
        %v2094 = vpack.c.b16 %v1882, %v1878
        %v2095 = vpack.c.b16 %v1883, %v1879
        %v2096 = vpack.c.b16 %v1888, %v1884
        %v2097 = vpack.c.b16 %v1889, %v1885
        %v2098 = vpack.c.b16 %v1890, %v1886
        %v2099 = vpack.c.b16 %v1891, %v1887
        %v2100 = vpack.c.b16 %v1896, %v1892
        %v2101 = vpack.c.b16 %v1897, %v1893
        %v2102 = vpack.c.b16 %v1898, %v1894
        %v2103 = vpack.c.b16 %v1899, %v1895
        %v2104 = vpack.c.b16 %v1904, %v1900
        %v2105 = vpack.c.b16 %v1905, %v1901
        %v2106 = vpack.c.b16 %v1906, %v1902
        %v2107 = vpack.c.b16 %v1907, %v1903
        %v2108 = vpack.c.b16 %v1912, %v1908
        %v2109 = vpack.c.b16 %v1913, %v1909
        %v2110 = vpack.c.b16 %v1914, %v1910
        %v2111 = vpack.c.b16 %v1915, %v1911
        %v2112 = vpack.c.b16 %v1920, %v1916
        %v2113 = vpack.c.b16 %v1921, %v1917
        %v2114 = vpack.c.b16 %v1922, %v1918
        %v2115 = vpack.c.b16 %v1923, %v1919
        %v2116 = vpack.c.b16 %v1928, %v1924
        %v2117 = vpack.c.b16 %v1929, %v1925
        %v2118 = vpack.c.b16 %v1930, %v1926
        %v2119 = vpack.c.b16 %v1931, %v1927
        %v2120 = vpack.c.b16 %v1936, %v1932
        %v2121 = vpack.c.b16 %v1937, %v1933
        %v2122 = vpack.c.b16 %v1938, %v1934
        %v2123 = vpack.c.b16 %v1939, %v1935
        %v2124 = vpack.c.b16 %v1944, %v1940
        %v2125 = vpack.c.b16 %v1945, %v1941
        %v2126 = vpack.c.b16 %v1946, %v1942
        %v2127 = vpack.c.b16 %v1947, %v1943
        %v2128 = vpack.c.b16 %v1952, %v1948
        %v2129 = vpack.c.b16 %v1953, %v1949
        %v2130 = vpack.c.b16 %v1954, %v1950
        %v2131 = vpack.c.b16 %v1955, %v1951
        %v2132 = vpack.c.b16 %v1960, %v1956
        %v2133 = vpack.c.b16 %v1961, %v1957
        %v2134 = vpack.c.b16 %v1962, %v1958
        %v2135 = vpack.c.b16 %v1963, %v1959
        %v2136 = vpack.c.b16 %v1968, %v1964
        %v2137 = vpack.c.b16 %v1969, %v1965
        %v2138 = vpack.c.b16 %v1970, %v1966
        %v2139 = vpack.c.b16 %v1971, %v1967
        %v2140 = vpack.c.b16 %v1976, %v1972
        %v2141 = vpack.c.b16 %v1977, %v1973
        %v2142 = vpack.c.b16 %v1978, %v1974
        %v2143 = vpack.c.b16 %v1979, %v1975
        %v2144 = vpack.c.b16 %v1984, %v1980
        %v2145 = vpack.c.b16 %v1985, %v1981
        %v2146 = vpack.c.b16 %v1986, %v1982
        %v2147 = vpack.c.b16 %v1987, %v1983
        %v2148 = vpack.c.b16 %v1992, %v1988
        %v2149 = vpack.c.b16 %v1993, %v1989
        %v2150 = vpack.c.b16 %v1994, %v1990
        %v2151 = vpack.c.b16 %v1995, %v1991
        %v2152 = vpack.c.b16 %v2000, %v1996
        %v2153 = vpack.c.b16 %v2001, %v1997
        %v2154 = vpack.c.b16 %v2002, %v1998
        %v2155 = vpack.c.b16 %v2003, %v1999
        %v2156 = vpack.c.b16 %v2008, %v2004
        %v2157 = vpack.c.b16 %v2009, %v2005
        %v2158 = vpack.c.b16 %v2010, %v2006
        %v2159 = vpack.c.b16 %v2011, %v2007
        %v2160 = vpack.c.b16 %v2016, %v2012
        %v2161 = vpack.c.b16 %v2017, %v2013
        %v2162 = vpack.c.b16 %v2018, %v2014
        %v2163 = vpack.c.b16 %v2019, %v2015
        %v2164 = vpack.c.b16 %v2024, %v2020
        %v2165 = vpack.c.b16 %v2025, %v2021
        %v2166 = vpack.c.b16 %v2026, %v2022
        %v2167 = vpack.c.b16 %v2027, %v2023
        %v2168 = vpack.c.b16 %v2032, %v2028
        %v2169 = vpack.c.b16 %v2033, %v2029
        %v2170 = vpack.c.b16 %v2034, %v2030
        %v2171 = vpack.c.b16 %v2035, %v2031
        %v2172 = vpack.c.b16 %v2040, %v2036
        %v2173 = vpack.c.b16 %v2041, %v2037
        %v2174 = vpack.c.b16 %v2042, %v2038
        %v2175 = vpack.c.b16 %v2043, %v2039
        %v2176 = vpack.c.b16 %v2048, %v2044
        %v2177 = vpack.c.b16 %v2049, %v2045
        %v2178 = vpack.c.b16 %v2050, %v2046
        %v2179 = vpack.c.b16 %v2051, %v2047
        %2308 = vmatprep.subr.bf16.mxu0 %v2053
        %2309 = vmatpush1.bf16.msra.mxu0 %v2052
        %2310 = vmatprep.subr.bf16.mxu0 %v2057
        %2311 = vmatpush1.bf16.msra.mxu0 %v2056
        %2312 = vmatprep.subr.bf16.mxu0 %v2061
        %2313 = vmatpush1.bf16.msra.mxu0 %v2060
        %2314 = vmatprep.subr.bf16.mxu0 %v2065
        %2315 = vmatpush1.bf16.msra.mxu0 %v2064
        %2316 = vmatprep.subr.bf16.mxu0 %v2069
        %2317 = vmatpush1.bf16.msra.mxu0 %v2068
        %2318 = vmatprep.subr.bf16.mxu0 %v2073
        %2319 = vmatpush1.bf16.msra.mxu0 %v2072
        %2320 = vmatprep.subr.bf16.mxu0 %v2077
        %2321 = vmatpush1.bf16.msra.mxu0 %v2076
        %2322 = vmatprep.subr.bf16.mxu0 %v2081
        %2323 = vmatpush1.bf16.msra.mxu0 %v2080
        %2324 = vmatprep.subr.bf16.mxu0 %v2085
        %2325 = vmatpush1.bf16.msra.mxu0 %v2084
        %2326 = vmatprep.subr.bf16.mxu0 %v2089
        %2327 = vmatpush1.bf16.msra.mxu0 %v2088
        %2328 = vmatprep.subr.bf16.mxu0 %v2093
        %2329 = vmatpush1.bf16.msra.mxu0 %v2092
        %2330 = vmatprep.subr.bf16.mxu0 %v2097
        %2331 = vmatpush1.bf16.msra.mxu0 %v2096
        %2332 = vmatprep.subr.bf16.mxu0 %v2101
        %2333 = vmatpush1.bf16.msra.mxu0 %v2100
        %2334 = vmatprep.subr.bf16.mxu0 %v2105
        %2335 = vmatpush1.bf16.msra.mxu0 %v2104
        %2336 = vmatprep.subr.bf16.mxu0 %v2109
        %2337 = vmatpush1.bf16.msra.mxu0 %v2108
        %2338 = vmatprep.subr.bf16.mxu0 %v2113
        %2339 = vmatpush1.bf16.msra.mxu0 %v2112
        %2340 = vmatprep.mubr.bf16.mxu0 %v1516
        %2341 = vmatmul.mubr.bf16.gmra.mrb[0].mxu0 %v1515
        %v2342 = vpop.f32.mrb[0].mxu0
        %v2343 = vadd.f32 %v1651, %v2342
        %v2344 = vpop.f32.mrb[0].mxu0
        %v2345 = vadd.f32 %v1655, %v2344
        %v2346 = vpop.f32.mrb[0].mxu0
        %v2347 = vpop.f32.mrb[0].mxu0
        %2348 = vdwg.mxu0
        %2349 = vmatprep.subr.bf16.mxu0 %v2117
        %2350 = vmatpush1.bf16.msra.mxu0 %v2116
        %2351 = vmatprep.subr.bf16.mxu0 %v2121
        %2352 = vmatpush1.bf16.msra.mxu0 %v2120
        %2353 = vmatprep.subr.bf16.mxu0 %v2125
        %2354 = vmatpush1.bf16.msra.mxu0 %v2124
        %2355 = vmatprep.subr.bf16.mxu0 %v2129
        %2356 = vmatpush1.bf16.msra.mxu0 %v2128
        %2357 = vmatprep.subr.bf16.mxu0 %v2133
        %2358 = vmatpush1.bf16.msra.mxu0 %v2132
        %2359 = vmatprep.subr.bf16.mxu0 %v2137
        %2360 = vmatpush1.bf16.msra.mxu0 %v2136
        %2361 = vmatprep.subr.bf16.mxu0 %v2141
        %2362 = vmatpush1.bf16.msra.mxu0 %v2140
        %2363 = vmatprep.subr.bf16.mxu0 %v2145
        %2364 = vmatpush1.bf16.msra.mxu0 %v2144
        %2365 = vmatprep.subr.bf16.mxu0 %v2149
        %2366 = vmatpush1.bf16.msra.mxu0 %v2148
        %2367 = vmatprep.subr.bf16.mxu0 %v2153
        %2368 = vmatpush1.bf16.msra.mxu0 %v2152
        %2369 = vmatprep.subr.bf16.mxu0 %v2157
        %2370 = vmatpush1.bf16.msra.mxu0 %v2156
        %2371 = vmatprep.subr.bf16.mxu0 %v2161
        %2372 = vmatpush1.bf16.msra.mxu0 %v2160
        %2373 = vmatprep.subr.bf16.mxu0 %v2165
        %2374 = vmatpush1.bf16.msra.mxu0 %v2164
        %2375 = vmatprep.subr.bf16.mxu0 %v2169
        %2376 = vmatpush1.bf16.msra.mxu0 %v2168
        %2377 = vmatprep.subr.bf16.mxu0 %v2173
        %2378 = vmatpush1.bf16.msra.mxu0 %v2172
        %2379 = vmatprep.subr.bf16.mxu0 %v2177
        %2380 = vmatpush1.bf16.msra.mxu0 %v2176
        %2381 = vmatprep.mubr.bf16.mxu0 %v1518
        %2382 = vmatmul.mubr.bf16.gmra.mrb[0].mxu0 %v1517
        %v2383 = vpop.f32.mrb[0].mxu0
        %v2384 = vadd.f32 %v2343, %v2383
        %v2385 = vpop.f32.mrb[0].mxu0
        %v2386 = vadd.f32 %v2345, %v2385
        %v2387 = vpop.f32.mrb[0].mxu0
        %v2388 = vpop.f32.mrb[0].mxu0
        %2389 = vdwg.mxu0
        %2390 = vmatprep.subr.bf16.mxu0 %v2055
        %2391 = vmatpush1.bf16.msra.mxu0 %v2054
        %2392 = vmatprep.subr.bf16.mxu0 %v2059
        %2393 = vmatpush1.bf16.msra.mxu0 %v2058
        %2394 = vmatprep.subr.bf16.mxu0 %v2063
        %2395 = vmatpush1.bf16.msra.mxu0 %v2062
        %2396 = vmatprep.subr.bf16.mxu0 %v2067
        %2397 = vmatpush1.bf16.msra.mxu0 %v2066
        %2398 = vmatprep.subr.bf16.mxu0 %v2071
        %2399 = vmatpush1.bf16.msra.mxu0 %v2070
        %2400 = vmatprep.subr.bf16.mxu0 %v2075
        %2401 = vmatpush1.bf16.msra.mxu0 %v2074
        %2402 = vmatprep.subr.bf16.mxu0 %v2079
        %2403 = vmatpush1.bf16.msra.mxu0 %v2078
        %2404 = vmatprep.subr.bf16.mxu0 %v2083
        %2405 = vmatpush1.bf16.msra.mxu0 %v2082
        %2406 = vmatprep.subr.bf16.mxu0 %v2087
        %2407 = vmatpush1.bf16.msra.mxu0 %v2086
        %2408 = vmatprep.subr.bf16.mxu0 %v2091
        %2409 = vmatpush1.bf16.msra.mxu0 %v2090
        %2410 = vmatprep.subr.bf16.mxu0 %v2095
        %2411 = vmatpush1.bf16.msra.mxu0 %v2094
        %2412 = vmatprep.subr.bf16.mxu0 %v2099
        %2413 = vmatpush1.bf16.msra.mxu0 %v2098
        %2414 = vmatprep.subr.bf16.mxu0 %v2103
        %2415 = vmatpush1.bf16.msra.mxu0 %v2102
        %2416 = vmatprep.subr.bf16.mxu0 %v2107
        %2417 = vmatpush1.bf16.msra.mxu0 %v2106
        %2418 = vmatprep.subr.bf16.mxu0 %v2111
        %2419 = vmatpush1.bf16.msra.mxu0 %v2110
        %2420 = vmatprep.subr.bf16.mxu0 %v2115
        %2421 = vmatpush1.bf16.msra.mxu0 %v2114
        %2422 = vmatprep.mubr.bf16.mxu0 %v1516
        %2423 = vmatmul.mubr.bf16.gmra.mrb[0].mxu0 %v1515
        %v2424 = vpop.f32.mrb[0].mxu0
        %v2425 = vadd.f32 %v1659, %v2424
        %v2426 = vpop.f32.mrb[0].mxu0
        %v2427 = vadd.f32 %v1663, %v2426
        %v2428 = vpop.f32.mrb[0].mxu0
        %v2429 = vpop.f32.mrb[0].mxu0
        %2430 = vdwg.mxu0
        %2431 = vmatprep.subr.bf16.mxu0 %v2119
        %2432 = vmatpush1.bf16.msra.mxu0 %v2118
        %2433 = vmatprep.subr.bf16.mxu0 %v2123
        %2434 = vmatpush1.bf16.msra.mxu0 %v2122
        %2435 = vmatprep.subr.bf16.mxu0 %v2127
        %2436 = vmatpush1.bf16.msra.mxu0 %v2126
        %2437 = vmatprep.subr.bf16.mxu0 %v2131
        %2438 = vmatpush1.bf16.msra.mxu0 %v2130
        %2439 = vmatprep.subr.bf16.mxu0 %v2135
        %2440 = vmatpush1.bf16.msra.mxu0 %v2134
        %2441 = vmatprep.subr.bf16.mxu0 %v2139
        %2442 = vmatpush1.bf16.msra.mxu0 %v2138
        %2443 = vmatprep.subr.bf16.mxu0 %v2143
        %2444 = vmatpush1.bf16.msra.mxu0 %v2142
        %2445 = vmatprep.subr.bf16.mxu0 %v2147
        %2446 = vmatpush1.bf16.msra.mxu0 %v2146
        %2447 = vmatprep.subr.bf16.mxu0 %v2151
        %2448 = vmatpush1.bf16.msra.mxu0 %v2150
        %2449 = vmatprep.subr.bf16.mxu0 %v2155
        %2450 = vmatpush1.bf16.msra.mxu0 %v2154
        %2451 = vmatprep.subr.bf16.mxu0 %v2159
        %2452 = vmatpush1.bf16.msra.mxu0 %v2158
        %2453 = vmatprep.subr.bf16.mxu0 %v2163
        %2454 = vmatpush1.bf16.msra.mxu0 %v2162
        %2455 = vmatprep.subr.bf16.mxu0 %v2167
        %2456 = vmatpush1.bf16.msra.mxu0 %v2166
        %2457 = vmatprep.subr.bf16.mxu0 %v2171
        %2458 = vmatpush1.bf16.msra.mxu0 %v2170
        %2459 = vmatprep.subr.bf16.mxu0 %v2175
        %2460 = vmatpush1.bf16.msra.mxu0 %v2174
        %2461 = vmatprep.subr.bf16.mxu0 %v2179
        %2462 = vmatpush1.bf16.msra.mxu0 %v2178
        %2463 = vmatprep.mubr.bf16.mxu0 %v1518
        %2464 = vmatmul.mubr.bf16.gmra.mrb[0].mxu0 %v1517
        %v2465 = vpop.f32.mrb[0].mxu0
        %v2466 = vadd.f32 %v2425, %v2465
        %v2467 = vpop.f32.mrb[0].mxu0
        %v2468 = vadd.f32 %v2427, %v2467
        %v2469 = vpop.f32.mrb[0].mxu0
        %v2470 = vpop.f32.mrb[0].mxu0
        %2471 = vdwg.mxu0
        %v2472 = vmax.f32 %v2384, 0.0
        %v2473 = vmax.f32 %v2386, 0.0
        %v2474 = vmax.f32 %v2466, 0.0
        %v2475 = vmax.f32 %v2468, 0.0
        %v2476 = vpack.c.bf16 %v2472, %v2472
        %v2477 = vpack.c.bf16 %v2473, %v2473
        %v2478 = vpack.c.bf16 %v2474, %v2474
        %v2479 = vpack.c.bf16 %v2475, %v2475
        %v2480 = vld [vmem:[#allocation11] sm:$0xf]
        %v2481 = vld [vmem:[#allocation11 + $0x4] sm:$0xf]
        %v2482 = vld [vmem:[#allocation11 + $0x8] sm:$0xf]
        %v2483 = vld [vmem:[#allocation11 + $0xc] sm:$0xf]
        %v2484 = vld [vmem:[#allocation11 + $0x10] sm:$0xf]
        %v2485 = vld [vmem:[#allocation11 + $0x14] sm:$0xf]
        %v2486 = vld [vmem:[#allocation11 + $0x18] sm:$0xf]
        %v2487 = vld [vmem:[#allocation11 + $0x1c] sm:$0xf]
        %v2488 = vld [vmem:[#allocation11 + $0x20] sm:$0xf]
        %v2489 = vld [vmem:[#allocation11 + $0x24] sm:$0xf]
        %v2490 = vld [vmem:[#allocation11 + $0x28] sm:$0xf]
        %v2491 = vld [vmem:[#allocation11 + $0x2c] sm:$0xf]
        %v2492 = vld [vmem:[#allocation11 + $0x30] sm:$0xf]
        %v2493 = vld [vmem:[#allocation11 + $0x34] sm:$0xf]
        %v2494 = vld [vmem:[#allocation11 + $0x38] sm:$0xf]
        %v2495 = vld [vmem:[#allocation11 + $0x3c] sm:$0xf]
        %v2496 = vld [vmem:[#allocation11 + $0x40] sm:$0xf]
        %v2497 = vld [vmem:[#allocation11 + $0x44] sm:$0xf]
        %v2498 = vld [vmem:[#allocation11 + $0x48] sm:$0xf]
        %v2499 = vld [vmem:[#allocation11 + $0x4c] sm:$0xf]
        %v2500 = vld [vmem:[#allocation11 + $0x50] sm:$0xf]
        %v2501 = vld [vmem:[#allocation11 + $0x54] sm:$0xf]
        %v2502 = vld [vmem:[#allocation11 + $0x58] sm:$0xf]
        %v2503 = vld [vmem:[#allocation11 + $0x5c] sm:$0xf]
        %v2504 = vld [vmem:[#allocation11 + $0x60] sm:$0xf]
        %v2505 = vld [vmem:[#allocation11 + $0x64] sm:$0xf]
        %v2506 = vld [vmem:[#allocation11 + $0x68] sm:$0xf]
        %v2507 = vld [vmem:[#allocation11 + $0x6c] sm:$0xf]
        %v2508 = vld [vmem:[#allocation11 + $0x70] sm:$0xf]
        %v2509 = vld [vmem:[#allocation11 + $0x74] sm:$0xf]
        %v2510 = vld [vmem:[#allocation11 + $0x78] sm:$0xf]
        %v2511 = vld [vmem:[#allocation11 + $0x7c] sm:$0xf]
        %v2512 = vld [vmem:[#allocation11 + $0x80] sm:$0xf]
        %v2513 = vld [vmem:[#allocation11 + $0x84] sm:$0xf]
        %v2514 = vld [vmem:[#allocation11 + $0x88] sm:$0xf]
        %v2515 = vld [vmem:[#allocation11 + $0x8c] sm:$0xf]
        %v2516 = vld [vmem:[#allocation11 + $0x90] sm:$0xf]
        %v2517 = vld [vmem:[#allocation11 + $0x94] sm:$0xf]
        %v2518 = vld [vmem:[#allocation11 + $0x98] sm:$0xf]
        %v2519 = vld [vmem:[#allocation11 + $0x9c] sm:$0xf]
        %v2520 = vld [vmem:[#allocation11 + $0xa0] sm:$0xf]
        %v2521 = vld [vmem:[#allocation11 + $0xa4] sm:$0xf]
        %v2522 = vld [vmem:[#allocation11 + $0xa8] sm:$0xf]
        %v2523 = vld [vmem:[#allocation11 + $0xac] sm:$0xf]
        %v2524 = vld [vmem:[#allocation11 + $0xb0] sm:$0xf]
        %v2525 = vld [vmem:[#allocation11 + $0xb4] sm:$0xf]
        %v2526 = vld [vmem:[#allocation11 + $0xb8] sm:$0xf]
        %v2527 = vld [vmem:[#allocation11 + $0xbc] sm:$0xf]
        %v2528 = vld [vmem:[#allocation11 + $0xc0] sm:$0xf]
        %v2529 = vld [vmem:[#allocation11 + $0xc4] sm:$0xf]
        %v2530 = vld [vmem:[#allocation11 + $0xc8] sm:$0xf]
        %v2531 = vld [vmem:[#allocation11 + $0xcc] sm:$0xf]
        %v2532 = vld [vmem:[#allocation11 + $0xd0] sm:$0xf]
        %v2533 = vld [vmem:[#allocation11 + $0xd4] sm:$0xf]
        %v2534 = vld [vmem:[#allocation11 + $0xd8] sm:$0xf]
        %v2535 = vld [vmem:[#allocation11 + $0xdc] sm:$0xf]
        %v2536 = vld [vmem:[#allocation11 + $0xe0] sm:$0xf]
        %v2537 = vld [vmem:[#allocation11 + $0xe4] sm:$0xf]
        %v2538 = vld [vmem:[#allocation11 + $0xe8] sm:$0xf]
        %v2539 = vld [vmem:[#allocation11 + $0xec] sm:$0xf]
        %v2540 = vld [vmem:[#allocation11 + $0xf0] sm:$0xf]
        %v2541 = vld [vmem:[#allocation11 + $0xf4] sm:$0xf]
        %v2542 = vld [vmem:[#allocation11 + $0xf8] sm:$0xf]
        %v2543 = vld [vmem:[#allocation11 + $0xfc] sm:$0xf]
        %v2608 = vunpack.c.l.b16 %v2480
        %v2609 = vunpack.c.l.b16 %v2481
        %v2610 = vunpack.c.l.b16 %v2482
        %v2611 = vunpack.c.l.b16 %v2483
        %v2612 = vunpack.c.l.b16 %v2484
        %v2613 = vunpack.c.l.b16 %v2485
        %v2614 = vunpack.c.l.b16 %v2486
        %v2615 = vunpack.c.l.b16 %v2487
        %v2616 = vunpack.c.l.b16 %v2488
        %v2617 = vunpack.c.l.b16 %v2489
        %v2618 = vunpack.c.l.b16 %v2490
        %v2619 = vunpack.c.l.b16 %v2491
        %v2620 = vunpack.c.l.b16 %v2492
        %v2621 = vunpack.c.l.b16 %v2493
        %v2622 = vunpack.c.l.b16 %v2494
        %v2623 = vunpack.c.l.b16 %v2495
        %v2624 = vunpack.c.l.b16 %v2496
        %v2625 = vunpack.c.l.b16 %v2497
        %v2626 = vunpack.c.l.b16 %v2498
        %v2627 = vunpack.c.l.b16 %v2499
        %v2628 = vunpack.c.l.b16 %v2500
        %v2629 = vunpack.c.l.b16 %v2501
        %v2630 = vunpack.c.l.b16 %v2502
        %v2631 = vunpack.c.l.b16 %v2503
        %v2632 = vunpack.c.l.b16 %v2504
        %v2633 = vunpack.c.l.b16 %v2505
        %v2634 = vunpack.c.l.b16 %v2506
        %v2635 = vunpack.c.l.b16 %v2507
        %v2636 = vunpack.c.l.b16 %v2508
        %v2637 = vunpack.c.l.b16 %v2509
        %v2638 = vunpack.c.l.b16 %v2510
        %v2639 = vunpack.c.l.b16 %v2511
        %v2640 = vunpack.c.l.b16 %v2512
        %v2641 = vunpack.c.l.b16 %v2513
        %v2642 = vunpack.c.l.b16 %v2514
        %v2643 = vunpack.c.l.b16 %v2515
        %v2644 = vunpack.c.l.b16 %v2516
        %v2645 = vunpack.c.l.b16 %v2517
        %v2646 = vunpack.c.l.b16 %v2518
        %v2647 = vunpack.c.l.b16 %v2519
        %v2648 = vunpack.c.l.b16 %v2520
        %v2649 = vunpack.c.l.b16 %v2521
        %v2650 = vunpack.c.l.b16 %v2522
        %v2651 = vunpack.c.l.b16 %v2523
        %v2652 = vunpack.c.l.b16 %v2524
        %v2653 = vunpack.c.l.b16 %v2525
        %v2654 = vunpack.c.l.b16 %v2526
        %v2655 = vunpack.c.l.b16 %v2527
        %v2656 = vunpack.c.l.b16 %v2528
        %v2657 = vunpack.c.l.b16 %v2529
        %v2658 = vunpack.c.l.b16 %v2530
        %v2659 = vunpack.c.l.b16 %v2531
        %v2660 = vunpack.c.l.b16 %v2532
        %v2661 = vunpack.c.l.b16 %v2533
        %v2662 = vunpack.c.l.b16 %v2534
        %v2663 = vunpack.c.l.b16 %v2535
        %v2664 = vunpack.c.l.b16 %v2536
        %v2665 = vunpack.c.l.b16 %v2537
        %v2666 = vunpack.c.l.b16 %v2538
        %v2667 = vunpack.c.l.b16 %v2539
        %v2668 = vunpack.c.l.b16 %v2540
        %v2669 = vunpack.c.l.b16 %v2541
        %v2670 = vunpack.c.l.b16 %v2542
        %v2671 = vunpack.c.l.b16 %v2543
        %v2672 = vpack.c.b16 %v2609, %v2608
        %v2673 = vpack.c.b16 %v2611, %v2610
        %v2674 = vpack.c.b16 %v2613, %v2612
        %v2675 = vpack.c.b16 %v2615, %v2614
        %v2676 = vpack.c.b16 %v2617, %v2616
        %v2677 = vpack.c.b16 %v2619, %v2618
        %v2678 = vpack.c.b16 %v2621, %v2620
        %v2679 = vpack.c.b16 %v2623, %v2622
        %v2680 = vpack.c.b16 %v2625, %v2624
        %v2681 = vpack.c.b16 %v2627, %v2626
        %v2682 = vpack.c.b16 %v2629, %v2628
        %v2683 = vpack.c.b16 %v2631, %v2630
        %v2684 = vpack.c.b16 %v2633, %v2632
        %v2685 = vpack.c.b16 %v2635, %v2634
        %v2686 = vpack.c.b16 %v2637, %v2636
        %v2687 = vpack.c.b16 %v2639, %v2638
        %v2688 = vpack.c.b16 %v2641, %v2640
        %v2689 = vpack.c.b16 %v2643, %v2642
        %v2690 = vpack.c.b16 %v2645, %v2644
        %v2691 = vpack.c.b16 %v2647, %v2646
        %v2692 = vpack.c.b16 %v2649, %v2648
        %v2693 = vpack.c.b16 %v2651, %v2650
        %v2694 = vpack.c.b16 %v2653, %v2652
        %v2695 = vpack.c.b16 %v2655, %v2654
        %v2696 = vpack.c.b16 %v2657, %v2656
        %v2697 = vpack.c.b16 %v2659, %v2658
        %v2698 = vpack.c.b16 %v2661, %v2660
        %v2699 = vpack.c.b16 %v2663, %v2662
        %v2700 = vpack.c.b16 %v2665, %v2664
        %v2701 = vpack.c.b16 %v2667, %v2666
        %v2702 = vpack.c.b16 %v2669, %v2668
        %v2703 = vpack.c.b16 %v2671, %v2670
        %2736 = vmatprep.subr.bf16.mxu0 0
        %2737 = vmatpush1.bf16.msra.mxu0 %v2672
        %2738 = vmatprep.subr.bf16.mxu0 0
        %2739 = vmatpush1.bf16.msra.mxu0 %v2673
        %2740 = vmatprep.subr.bf16.mxu0 0
        %2741 = vmatpush1.bf16.msra.mxu0 %v2674
        %2742 = vmatprep.subr.bf16.mxu0 0
        %2743 = vmatpush1.bf16.msra.mxu0 %v2675
        %2744 = vmatprep.subr.bf16.mxu0 0
        %2745 = vmatpush1.bf16.msra.mxu0 %v2676
        %2746 = vmatprep.subr.bf16.mxu0 0
        %2747 = vmatpush1.bf16.msra.mxu0 %v2677
        %2748 = vmatprep.subr.bf16.mxu0 0
        %2749 = vmatpush1.bf16.msra.mxu0 %v2678
        %2750 = vmatprep.subr.bf16.mxu0 0
        %2751 = vmatpush1.bf16.msra.mxu0 %v2679
        %2752 = vmatprep.subr.bf16.mxu0 0
        %2753 = vmatpush1.bf16.msra.mxu0 %v2680
        %2754 = vmatprep.subr.bf16.mxu0 0
        %2755 = vmatpush1.bf16.msra.mxu0 %v2681
        %2756 = vmatprep.subr.bf16.mxu0 0
        %2757 = vmatpush1.bf16.msra.mxu0 %v2682
        %2758 = vmatprep.subr.bf16.mxu0 0
        %2759 = vmatpush1.bf16.msra.mxu0 %v2683
        %2760 = vmatprep.subr.bf16.mxu0 0
        %2761 = vmatpush1.bf16.msra.mxu0 %v2684
        %2762 = vmatprep.subr.bf16.mxu0 0
        %2763 = vmatpush1.bf16.msra.mxu0 %v2685
        %2764 = vmatprep.subr.bf16.mxu0 0
        %2765 = vmatpush1.bf16.msra.mxu0 %v2686
        %2766 = vmatprep.subr.bf16.mxu0 0
        %2767 = vmatpush1.bf16.msra.mxu0 %v2687
        %2768 = vmatprep.mubr.bf16.mxu0 %v2477
        %2769 = vmatmul.mubr.bf16.gmra.mrb[0].mxu0 %v2476
        %v2770 = vpop.f32.mrb[0].mxu0
        %v2771 = vadd.f32 %v407, %v2770
        %v2772 = vpop.f32.mrb[0].mxu0
        %v2773 = vpop.f32.mrb[0].mxu0
        %v2774 = vpop.f32.mrb[0].mxu0
        %2775 = vdwg.mxu0
        %2776 = vmatprep.subr.bf16.mxu0 0
        %2777 = vmatpush1.bf16.msra.mxu0 %v2688
        %2778 = vmatprep.subr.bf16.mxu0 0
        %2779 = vmatpush1.bf16.msra.mxu0 %v2689
        %2780 = vmatprep.subr.bf16.mxu0 0
        %2781 = vmatpush1.bf16.msra.mxu0 %v2690
        %2782 = vmatprep.subr.bf16.mxu0 0
        %2783 = vmatpush1.bf16.msra.mxu0 %v2691
        %2784 = vmatprep.subr.bf16.mxu0 0
        %2785 = vmatpush1.bf16.msra.mxu0 %v2692
        %2786 = vmatprep.subr.bf16.mxu0 0
        %2787 = vmatpush1.bf16.msra.mxu0 %v2693
        %2788 = vmatprep.subr.bf16.mxu0 0
        %2789 = vmatpush1.bf16.msra.mxu0 %v2694
        %2790 = vmatprep.subr.bf16.mxu0 0
        %2791 = vmatpush1.bf16.msra.mxu0 %v2695
        %2792 = vmatprep.subr.bf16.mxu0 0
        %2793 = vmatpush1.bf16.msra.mxu0 %v2696
        %2794 = vmatprep.subr.bf16.mxu0 0
        %2795 = vmatpush1.bf16.msra.mxu0 %v2697
        %2796 = vmatprep.subr.bf16.mxu0 0
        %2797 = vmatpush1.bf16.msra.mxu0 %v2698
        %2798 = vmatprep.subr.bf16.mxu0 0
        %2799 = vmatpush1.bf16.msra.mxu0 %v2699
        %2800 = vmatprep.subr.bf16.mxu0 0
        %2801 = vmatpush1.bf16.msra.mxu0 %v2700
        %2802 = vmatprep.subr.bf16.mxu0 0
        %2803 = vmatpush1.bf16.msra.mxu0 %v2701
        %2804 = vmatprep.subr.bf16.mxu0 0
        %2805 = vmatpush1.bf16.msra.mxu0 %v2702
        %2806 = vmatprep.subr.bf16.mxu0 0
        %2807 = vmatpush1.bf16.msra.mxu0 %v2703
        %2808 = vmatprep.mubr.bf16.mxu0 %v2479
        %2809 = vmatmul.mubr.bf16.gmra.mrb[0].mxu0 %v2478
        %v2810 = vpop.f32.mrb[0].mxu0
        %v2811 = vadd.f32 %v2771, %v2810
        %v2812 = vpop.f32.mrb[0].mxu0
        %v2813 = vpop.f32.mrb[0].mxu0
        %v2814 = vpop.f32.mrb[0].mxu0
        %2815 = vdwg.mxu0
        %v2816 = vlaneseq
        %v2817 = vand.u32 %v2816, 127
        %vm2818 = vcmp.lt.s32.totalorder %v2817, 10
        %v2819 = vsel %vm2818, %v2811, -1e+30
        %2820 = vmax.xlane.f32.xlu0 %v2819
        %v2821 = vpop.xlane.xlu0 %2820
        %v2822 = vsub.f32 %v2819, %v2821
        %v2823 = vmul.f32 %v2822, 1.442695
        %v2824 = vpow.pop %v2823
        %v2825 = vsel %vm2818, %v2824, 0.0
        %2826 = vadd.xlane.f32.xlu0 %v2825
        %v2827 = vpop.xlane.xlu0 %2826
        %v2828 = vlog2.pop %v2827
        %v2829 = vmul.f32 %v2828, 0.6931472
        %v2830 = vsub.f32 %v2822, %v2829
        %v2831 = vsel %vm2818, %v2830, 0.0
        %v2832 = vld [vmem:[#allocation5] sm:$0xff]
        %v2833 = vmul.f32 %v2832, %v2831
        %2834 = vadd.xlane.f32.xlu0 %v2833
        %v2835 = vpop.xlane.xlu0 %2834
        %v2836 = vsub.f32 0.0, %v2835
        %v2837 = vcvt.s32.f32 %v2817
        %vm2838 = vcmp.ge.f32.partialorder %v2819, %v2821
        %v2839 = vsel %vm2838, %v2837, 128.0
        %2840 = vmin.xlane.f32.xlu0 %v2839
        %v2841 = vpop.xlane.xlu0 %2840
        %vm2842 = vcmp.eq.s32.totalorder %v2817, 10
        %v2843 = vsel %vm2842, %v2832, 0.0
        %2844 = vadd.xlane.f32.xlu0 %v2843
        %v2845 = vpop.xlane.xlu0 %2844
        %vm2846 = vcmp.eq.f32.partialorder %v2841, %v2845
        %v2847 = vsel %vm2846, 1, 0
        %v2848 = vcvt.s32.f32 %v2847
        %v2849 = vsub.f32 1.0, %v2848
        %vm2850 = vcmp.eq.s32.totalorder %v2817, 11
        %v2851 = vsel %vm2850, %v2849, %v2831
        %v2852 = vsel %vm2842, %v2836, %v2851
        %2853 = vst [vmem:[%s400] sm:$0xff] %v2852
        %s2854 = sand.u32 %s208, 1
        %s2855 = scalar_lea.sflag [#allocation4], %s2854
        %s2856 = sand.u32 %s208, 1
        %s2857 = smul.addr %s2856, 8
        %s2858 = scalar_lea.vmem [#allocation14], %s2857
        // Predicated region
        $region77: #{tpu_custom_call.1} parent=47 // pred_check
          %p2859 = pneg %p218
        $region78: #{tpu_custom_call.1} parent=47 // pred_check_branch
          %2861 = sbr.rel (%p2859) target = $region80
        $region79: #{tpu_custom_call.1} parent=47 // pred_region
          %s2863 = ssub.s32 128, 128
          %2864 = vsyncadd %s2855, %s2863
          %s2865 = sadd.s32 %s31, %s32
          %s2866 = smul.addr %s2865, 128
          %s2867 = scalar_lea.hbm %s7, %s2866
          %s2869 = sshll.u32 %s2858, 4
          %s2870 = int_to_ptr.vmem [resolvable:$true] %s2869
          %2872 = dma.vmem_to_hbm [thread:$0]  %s2870, 128, %s2867, %s2855
        $region80: #{tpu_custom_call.1} parent=47 // pred_fallthru
          _
      $region48: #{tpu_custom_call.1} parent=5 // pred_fallthru
        _
      %p2873 = scmp.le.s32.totalorder 2, %s22
      // Predicated region
      $region81: #{tpu_custom_call.1} parent=5 // pred_check
        %p2874 = pneg %p2873
      $region82: #{tpu_custom_call.1} parent=5 // pred_check_branch
        %2876 = sbr.rel (%p2874) target = $region84
      $region83: #{tpu_custom_call.1} parent=5 // pred_region
        %s2877 = ssub.s32 %s22, 2
        // Predicated region
        $region85: #{tpu_custom_call.1} parent=83 // pred_check
          %p2878 = pneg %p224
        $region86: #{tpu_custom_call.1} parent=83 // pred_check_branch
          %2880 = sbr.rel (%p2878) target = $region88
        $region87: #{tpu_custom_call.1} parent=83 // pred_region
          %s2881 = sand.u32 %s209, 1
          %s2882 = scalar_lea.sflag [#allocation4], %s2881
          %s2883 = sand.u32 %s209, 1
          %s2884 = smul.addr %s2883, 8
          %s2885 = scalar_lea.vmem [#allocation14], %s2884
          %2886 = dma.done %s2882, 128
        $region88: #{tpu_custom_call.1} parent=83 // pred_fallthru
          _
      $region84: #{tpu_custom_call.1} parent=5 // pred_fallthru
        _
    $region6: #{tpu_custom_call.1} parent=1 // loop_footer
      %s26 = sadd.s32 1, %s22
    $region7: #{tpu_custom_call.1} parent=1 // loop_footer_branch
      %21 = sbr.rel target = $region3
    $region8: #{tpu_custom_call.1} parent=1 // loop_exit
      _
    %2887 = vsyncpa [#allocation3], 1
    %s2888 = scalar_lea.sflag [#allocation3], 1
    %2889 = vsyncpa %s2888, 1
    %2890 = vsyncpa [#allocation6], 1
    %2891 = vsyncpa [#allocation9], 1
    %2892 = vsyncpa [#allocation12], 1
    %2893 = vsyncpa [#allocation4], 1
    %s2894 = scalar_lea.sflag [#allocation4], 1
    %2895 = vsyncpa %s2894, 1

</llo_original>
